<compile_context>
chip_gen: v5e
topology: v5e:2x2
jax: 0.10.0
libtpu: 0.0.40
codegen_flags: <defaults>
</compile_context>

<pallas_src>
import math

import jax
import jax.numpy as jnp
from jax.experimental import pallas as pl
from jax.experimental.pallas import tpu as pltpu

INPUT_DIM = 3
EMBED_DIM = 9
LINEAR_DIM = 9
N_HEADS = 3
HEAD_DIM = EMBED_DIM // N_HEADS
EPS = 1e-5  # nn.LayerNorm default


def _layer_norm(x2, gamma, beta):
    # LayerNorm over the last dim, biased variance (PyTorch semantics). x2: (R, D)
    mean = jnp.mean(x2, axis=-1, keepdims=True)
    var = jnp.mean((x2 - mean) ** 2, axis=-1, keepdims=True)
    return (x2 - mean) * jax.lax.rsqrt(var + EPS) * gamma + beta


def _mac_matmul(x2, w):
    """x2: (R, K) @ w: (K, N) with tiny K — VPU broadcast-multiply-add, no MXU."""
    acc = x2[:, 0:1] * w[0:1, :]
    for i in range(1, w.shape[0]):
        acc = acc + x2[:, i:i + 1] * w[i:i + 1, :]
    return acc


def encoder_kernel(x_ref, wq_ref, wk_ref, wv_ref, wo_ref,
                   g1_ref, b1_ref, g2_ref, b2_ref,
                   w1T_ref, bl1_ref, w2T_ref, bl2_ref,
                   out_ref):
    B, S, D = x_ref.shape
    G = wq_ref.shape[0]          # G = H * B  (group = (head, batch) pair, h-major)
    H = G // B

    # Row-wise math happens on the flattened (B*S, D) view (layout-preserving).
    x2 = x_ref[...].astype(jnp.float32).reshape(B * S, D)

    # --- layer_norm1 ---
    xn2 = _layer_norm(x2, g1_ref[...], b1_ref[...])                # (B*S, D)
    xn3 = xn2.reshape(B, S, D)

    # --- multi-head attention (mode='soft', no mask, qkv/o have no bias) ---
    # Replicate the normalized input over heads along a *leading* axis (cheap),
    # so every projection / attention op is a single batched einsum over G.
    xn_g = jnp.broadcast_to(xn3[None], (H, B, S, D)).reshape(G, S, D)

    q = jnp.einsum("gsd,gdk->gsk", xn_g, wq_ref[...],
                   preferred_element_type=jnp.float32)             # (G, S, Hd), pre-scaled
    k = jnp.einsum("gsd,gdk->gsk", xn_g, wk_ref[...],
                   preferred_element_type=jnp.float32)
    v = jnp.einsum("gsd,gdk->gsk", xn_g, wv_ref[...],
                   preferred_element_type=jnp.float32)

    logits = jnp.einsum("gqd,gkd->gqk", q, k,
                        preferred_element_type=jnp.float32)        # (G, S, S)
    logits = logits - jnp.max(logits, axis=-1, keepdims=True)
    p = jnp.exp(logits)
    attn = p * pl.reciprocal(jnp.sum(p, axis=-1, keepdims=True), approx=True)

    vals = jnp.einsum("gqk,gkd->gqd", attn, v,
                      preferred_element_type=jnp.float32)          # (G, S, Hd)
    # Per-group output projection, then sum over heads (leading-dim reduce):
    # equivalent to concat(heads) @ o_w.T, but with no lane-axis concat.
    proj = jnp.einsum("gsd,gdo->gso", vals, wo_ref[...],
                      preferred_element_type=jnp.float32)          # (G, S, D)
    attn_out = proj.reshape(H, B, S, D).sum(axis=0)                # (B, S, D)

    # --- residual + layer_norm2 ---
    y2 = xn2 + attn_out.reshape(B * S, D)
    yn2 = _layer_norm(y2, g2_ref[...], b2_ref[...])                # (B*S, D)

    # --- MLP: Linear -> ReLU -> Linear (dropout p=0.0 -> identity) ---
    h1 = jnp.maximum(_mac_matmul(yn2, w1T_ref[...]) + bl1_ref[...], 0.0)   # (B*S, L)
    h2 = _mac_matmul(h1, w2T_ref[...]) + bl2_ref[...]                      # (B*S, D)

    out_ref[...] = (yn2 + h2).reshape(B, S, D).astype(out_ref.dtype)


def encoder_forward(x, qkv_w, o_w, g1, b1, g2, b2, w1, bl1, w2, bl2):
    """x: (B, S, D). Weights in PyTorch (out_features, in_features) layout."""
    B, S, D = x.shape
    assert D == INPUT_DIM
    H, Hd, L = N_HEADS, HEAD_DIM, LINEAR_DIM

    # ---- wrapper-side weight plumbing (outside the kernel: layout only) ----
    # PyTorch qkv packing: column c of qkv_w.T -> (head h = c//(3*Hd),
    # part q/k/v = (c % (3*Hd)) // Hd, dim d = c % Hd).
    qkv_wT = qkv_w.T.reshape(D, H, 3, Hd)
    scale = 1.0 / math.sqrt(Hd)
    wq = jnp.transpose(qkv_wT[:, :, 0, :], (1, 0, 2)) * scale      # (H, D, Hd), scale folded
    wk = jnp.transpose(qkv_wT[:, :, 1, :], (1, 0, 2))              # (H, D, Hd)
    wv = jnp.transpose(qkv_wT[:, :, 2, :], (1, 0, 2))              # (H, D, Hd)
    # Group layout g = h*B + b (h-major): repeat each head's weight B times.
    wq_g = jnp.repeat(wq, B, axis=0)                               # (G, D, Hd)
    wk_g = jnp.repeat(wk, B, axis=0)
    wv_g = jnp.repeat(wv, B, axis=0)
    wo_g = jnp.repeat(o_w.T.reshape(H, Hd, D), B, axis=0)          # (G, Hd, D)

    w1T, w2T = w1.T, w2.T                                          # (D, L), (L, D)
    g1r, b1r = g1.reshape(1, D), b1.reshape(1, D)
    g2r, b2r = g2.reshape(1, D), b2.reshape(1, D)
    bl1r, bl2r = bl1.reshape(1, L), bl2.reshape(1, D)

    weights = (wq_g, wk_g, wv_g, wo_g, g1r, b1r, g2r, b2r, w1T, bl1r, w2T, bl2r)

    def full_spec(a):
        n = a.ndim
        return pl.BlockSpec(a.shape, lambda i, _n=n: (0,) * _n)

    # Single grid step: whole problem in one block (removes per-step overhead).
    # For large B one would tile over B with ~512 rows/step and mark it "parallel".
    return pl.pallas_call(
        encoder_kernel,
        out_shape=jax.ShapeDtypeStruct((B, S, D), x.dtype),
        grid_spec=pltpu.PrefetchScalarGridSpec(
            num_scalar_prefetch=0,
            grid=(1,),
            in_specs=[full_spec(x)] + [full_spec(w) for w in weights],
            out_specs=pl.BlockSpec((B, S, D), lambda i: (0, 0, 0)),
        ),
        compiler_params=pltpu.CompilerParams(dimension_semantics=("arbitrary",)),
    )(x, *weights)


def encoder_reference(x, qkv_w, o_w, g1, b1, g2, b2, w1, bl1, w2, bl2):
    """Pure-JAX reference mirroring the PyTorch forward (for verification)."""
    def ln(t, g, bta):
        m = jnp.mean(t, axis=-1, keepdims=True)
        v = jnp.mean((t - m) ** 2, axis=-1, keepdims=True)
        return (t - m) / jnp.sqrt(v + EPS) * g + bta

    B, S, D = x.shape
    xn = ln(x, g1, b1)
    qkv = xn @ qkv_w.T                                             # (B, S, 3E)
    qkv = qkv.reshape(B, S, N_HEADS, 3 * HEAD_DIM).transpose(0, 2, 1, 3)
    q, k, v = jnp.split(qkv, 3, axis=-1)
    logits = jnp.einsum("bhqd,bhkd->bhqk", q, k) / math.sqrt(HEAD_DIM)
    attn = jax.nn.softmax(logits, axis=-1)
    vals = jnp.einsum("bhqk,bhkd->bhqd", attn, v)
    vals = vals.transpose(0, 2, 1, 3).reshape(B, S, EMBED_DIM)
    attn_out = vals @ o_w.T
    y = xn + attn_out
    yn = ln(y, g2, b2)
    h = jax.nn.relu(yn @ w1.T + bl1)
    h = h @ w2.T + bl2
    return yn + h


if __name__ == "__main__":
    key = jax.random.PRNGKey(0)
    ks = jax.random.split(key, 8)

    B, S = 2, 8
    x = jax.random.normal(ks[0], (B, S, INPUT_DIM), dtype=jnp.float32)

    # Deterministic parameter init (shapes match the PyTorch module's __init__).
    qkv_w = jax.random.normal(ks[1], (3 * EMBED_DIM, INPUT_DIM), jnp.float32) * math.sqrt(
        2.0 / (3 * EMBED_DIM + INPUT_DIM))                         # xavier_normal_
    o_bound = math.sqrt(6.0 / (INPUT_DIM + EMBED_DIM))
    o_w = jax.random.uniform(ks[2], (INPUT_DIM, EMBED_DIM), jnp.float32,
                             -o_bound, o_bound)                    # xavier_uniform_
    g1 = jnp.ones((INPUT_DIM,), jnp.float32)
    b1 = jnp.zeros((INPUT_DIM,), jnp.float32)
    g2 = jnp.ones((INPUT_DIM,), jnp.float32)
    b2 = jnp.zeros((INPUT_DIM,), jnp.float32)
    w1 = jax.random.normal(ks[3], (LINEAR_DIM, INPUT_DIM), jnp.float32) * (1.0 / math.sqrt(INPUT_DIM))
    bl1 = jax.random.normal(ks[4], (LINEAR_DIM,), jnp.float32) * 0.1
    w2 = jax.random.normal(ks[5], (INPUT_DIM, LINEAR_DIM), jnp.float32) * (1.0 / math.sqrt(LINEAR_DIM))
    bl2 = jax.random.normal(ks[6], (INPUT_DIM,), jnp.float32) * 0.1

    params = (qkv_w, o_w, g1, b1, g2, b2, w1, bl1, w2, bl2)

    out = encoder_forward(x, *params)
    out = jax.block_until_ready(out)

    ref = encoder_reference(x, *params)
    assert out.shape == (B, S, INPUT_DIM)
    # Tolerance accounts for the EUP approximate reciprocal in the softmax.
    assert jnp.allclose(out, ref, atol=2e-3, rtol=2e-3), (
        f"max abs err {jnp.max(jnp.abs(out - ref))}")

    print("KERNEL_OK")
</pallas_src>

<mosaic_0001>
module attributes {stable_mosaic.version = 11 : i64} {
  func.func @encoder_kernel(%arg0: i32, %arg1: memref<2x8x3xf32, #tpu.memory_space<vmem>>, %arg2: memref<6x3x3xf32, #tpu.memory_space<vmem>>, %arg3: memref<6x3x3xf32, #tpu.memory_space<vmem>>, %arg4: memref<6x3x3xf32, #tpu.memory_space<vmem>>, %arg5: memref<6x3x3xf32, #tpu.memory_space<vmem>>, %arg6: memref<1x3xf32, #tpu.memory_space<vmem>>, %arg7: memref<1x3xf32, #tpu.memory_space<vmem>>, %arg8: memref<1x3xf32, #tpu.memory_space<vmem>>, %arg9: memref<1x3xf32, #tpu.memory_space<vmem>>, %arg10: memref<3x9xf32, #tpu.memory_space<vmem>>, %arg11: memref<1x9xf32, #tpu.memory_space<vmem>>, %arg12: memref<9x3xf32, #tpu.memory_space<vmem>>, %arg13: memref<1x3xf32, #tpu.memory_space<vmem>>, %arg14: memref<2x8x3xf32, #tpu.memory_space<vmem>>) attributes {dimension_semantics = [#tpu.dimension_semantics<arbitrary>], iteration_bounds = array<i64: 1>, scalar_prefetch = 0 : i64, scratch_operands = 0 : i64, tpu.core_type = #tpu.core_type<tc>, window_params = [{pipeline_mode = #tpu.pipeline_mode<synchronous>, transform_indices = @transform_0, window_bounds = array<i64: 2, 8, 3>}, {pipeline_mode = #tpu.pipeline_mode<synchronous>, transform_indices = @transform_1, window_bounds = array<i64: 6, 3, 3>}, {pipeline_mode = #tpu.pipeline_mode<synchronous>, transform_indices = @transform_2, window_bounds = array<i64: 6, 3, 3>}, {pipeline_mode = #tpu.pipeline_mode<synchronous>, transform_indices = @transform_3, window_bounds = array<i64: 6, 3, 3>}, {pipeline_mode = #tpu.pipeline_mode<synchronous>, transform_indices = @transform_4, window_bounds = array<i64: 6, 3, 3>}, {pipeline_mode = #tpu.pipeline_mode<synchronous>, transform_indices = @transform_5, window_bounds = array<i64: 1, 3>}, {pipeline_mode = #tpu.pipeline_mode<synchronous>, transform_indices = @transform_6, window_bounds = array<i64: 1, 3>}, {pipeline_mode = #tpu.pipeline_mode<synchronous>, transform_indices = @transform_7, window_bounds = array<i64: 1, 3>}, {pipeline_mode = #tpu.pipeline_mode<synchronous>, transform_indices = @transform_8, window_bounds = array<i64: 1, 3>}, {pipeline_mode = #tpu.pipeline_mode<synchronous>, transform_indices = @transform_9, window_bounds = array<i64: 3, 9>}, {pipeline_mode = #tpu.pipeline_mode<synchronous>, transform_indices = @transform_10, window_bounds = array<i64: 1, 9>}, {pipeline_mode = #tpu.pipeline_mode<synchronous>, transform_indices = @transform_11, window_bounds = array<i64: 9, 3>}, {pipeline_mode = #tpu.pipeline_mode<synchronous>, transform_indices = @transform_12, window_bounds = array<i64: 1, 3>}, {pipeline_mode = #tpu.pipeline_mode<synchronous>, transform_indices = @transform_13, window_bounds = array<i64: 2, 8, 3>}]} {
    %c0 = arith.constant 0 : index
    %c0_0 = arith.constant 0 : index
    %c0_1 = arith.constant 0 : index
    %0 = vector.load %arg1[%c0, %c0_0, %c0_1] : memref<2x8x3xf32, #tpu.memory_space<vmem>>, vector<2x8x3xf32>
    %1 = vector.shape_cast %0 : vector<2x8x3xf32> to vector<16x3xf32>
    %c0_2 = arith.constant 0 : index
    %c0_3 = arith.constant 0 : index
    %2 = vector.load %arg6[%c0_2, %c0_3] : memref<1x3xf32, #tpu.memory_space<vmem>>, vector<1x3xf32>
    %c0_4 = arith.constant 0 : index
    %c0_5 = arith.constant 0 : index
    %3 = vector.load %arg7[%c0_4, %c0_5] : memref<1x3xf32, #tpu.memory_space<vmem>>, vector<1x3xf32>
    %cst = arith.constant dense<0.000000e+00> : vector<16xf32>
    %4 = vector.multi_reduction <add>, %1, %cst [1] : vector<16x3xf32> to vector<16xf32>
    %5 = vector.shape_cast %4 : vector<16xf32> to vector<16x1xf32>
    %cst_6 = arith.constant 3.000000e+00 : f32
    %6 = vector.broadcast %cst_6 : f32 to vector<16x1xf32>
    %7 = arith.divf %5, %6 : vector<16x1xf32>
    %8 = vector.broadcast %7 : vector<16x1xf32> to vector<16x3xf32>
    %9 = arith.subf %1, %8 : vector<16x3xf32>
    %10 = arith.mulf %9, %9 : vector<16x3xf32>
    %cst_7 = arith.constant dense<0.000000e+00> : vector<16xf32>
    %11 = vector.multi_reduction <add>, %10, %cst_7 [1] : vector<16x3xf32> to vector<16xf32>
    %12 = vector.shape_cast %11 : vector<16xf32> to vector<16x1xf32>
    %cst_8 = arith.constant 3.000000e+00 : f32
    %13 = vector.broadcast %cst_8 : f32 to vector<16x1xf32>
    %14 = arith.divf %12, %13 : vector<16x1xf32>
    %15 = vector.broadcast %7 : vector<16x1xf32> to vector<16x3xf32>
    %16 = arith.subf %1, %15 : vector<16x3xf32>
    %cst_9 = arith.constant 9.99999974E-6 : f32
    %17 = vector.broadcast %cst_9 : f32 to vector<16x1xf32>
    %18 = arith.addf %14, %17 : vector<16x1xf32>
    %19 = math.rsqrt %18 : vector<16x1xf32>
    %20 = vector.broadcast %19 : vector<16x1xf32> to vector<16x3xf32>
    %21 = arith.mulf %16, %20 : vector<16x3xf32>
    %22 = vector.broadcast %2 : vector<1x3xf32> to vector<16x3xf32>
    %23 = arith.mulf %21, %22 : vector<16x3xf32>
    %24 = vector.broadcast %3 : vector<1x3xf32> to vector<16x3xf32>
    %25 = arith.addf %23, %24 : vector<16x3xf32>
    %26 = vector.shape_cast %25 : vector<16x3xf32> to vector<2x8x3xf32>
    %27 = vector.shape_cast %26 : vector<2x8x3xf32> to vector<1x2x8x3xf32>
    %28 = vector.shape_cast %27 : vector<1x2x8x3xf32> to vector<1x2x8x3xf32>
    %29 = vector.broadcast %28 : vector<1x2x8x3xf32> to vector<3x2x8x3xf32>
    %30 = vector.shape_cast %29 : vector<3x2x8x3xf32> to vector<6x8x3xf32>
    %c0_10 = arith.constant 0 : index
    %c0_11 = arith.constant 0 : index
    %c0_12 = arith.constant 0 : index
    %31 = vector.load %arg2[%c0_10, %c0_11, %c0_12] : memref<6x3x3xf32, #tpu.memory_space<vmem>>, vector<6x3x3xf32>
    "tpu.trace_start"() <{level = 10 : i32, message = "gsd,gdk->gsk"}> : () -> ()
    %cst_13 = arith.constant dense<0.000000e+00> : vector<6x8x3xf32>
    %32 = tpu.matmul %30, %31, %cst_13 {dimension_numbers = #tpu.dot_dimension_numbers<[2], [1], [1], [2], [0, 0, 0, 1, 1, 2], [0], [0]>} : vector<6x8x3xf32>, vector<6x3x3xf32>, vector<6x8x3xf32> -> vector<6x8x3xf32>
    "tpu.trace_stop"() : () -> ()
    %c0_14 = arith.constant 0 : index
    %c0_15 = arith.constant 0 : index
    %c0_16 = arith.constant 0 : index
    %33 = vector.load %arg3[%c0_14, %c0_15, %c0_16] : memref<6x3x3xf32, #tpu.memory_space<vmem>>, vector<6x3x3xf32>
    "tpu.trace_start"() <{level = 10 : i32, message = "gsd,gdk->gsk"}> : () -> ()
    %cst_17 = arith.constant dense<0.000000e+00> : vector<6x8x3xf32>
    %34 = tpu.matmul %30, %33, %cst_17 {dimension_numbers = #tpu.dot_dimension_numbers<[2], [1], [1], [2], [0, 0, 0, 1, 1, 2], [0], [0]>} : vector<6x8x3xf32>, vector<6x3x3xf32>, vector<6x8x3xf32> -> vector<6x8x3xf32>
    "tpu.trace_stop"() : () -> ()
    %c0_18 = arith.constant 0 : index
    %c0_19 = arith.constant 0 : index
    %c0_20 = arith.constant 0 : index
    %35 = vector.load %arg4[%c0_18, %c0_19, %c0_20] : memref<6x3x3xf32, #tpu.memory_space<vmem>>, vector<6x3x3xf32>
    "tpu.trace_start"() <{level = 10 : i32, message = "gsd,gdk->gsk"}> : () -> ()
    %cst_21 = arith.constant dense<0.000000e+00> : vector<6x8x3xf32>
    %36 = tpu.matmul %30, %35, %cst_21 {dimension_numbers = #tpu.dot_dimension_numbers<[2], [1], [1], [2], [0, 0, 0, 1, 1, 2], [0], [0]>} : vector<6x8x3xf32>, vector<6x3x3xf32>, vector<6x8x3xf32> -> vector<6x8x3xf32>
    "tpu.trace_stop"() : () -> ()
    "tpu.trace_start"() <{level = 10 : i32, message = "gqd,gkd->gqk"}> : () -> ()
    %cst_22 = arith.constant dense<0.000000e+00> : vector<6x8x8xf32>
    %37 = tpu.matmul %32, %34, %cst_22 {dimension_numbers = #tpu.dot_dimension_numbers<[2], [2], [1], [1], [0, 0, 0, 1, 1, 1], [0], [0]>} : vector<6x8x3xf32>, vector<6x8x3xf32>, vector<6x8x8xf32> -> vector<6x8x8xf32>
    "tpu.trace_stop"() : () -> ()
    %cst_23 = arith.constant dense<0xFF800000> : vector<6x8xf32>
    %38 = vector.multi_reduction <maximumf>, %37, %cst_23 [2] : vector<6x8x8xf32> to vector<6x8xf32>
    %39 = vector.shape_cast %38 : vector<6x8xf32> to vector<6x8x1xf32>
    %40 = vector.broadcast %39 : vector<6x8x1xf32> to vector<6x8x8xf32>
    %41 = arith.subf %37, %40 : vector<6x8x8xf32>
    %42 = math.exp %41 : vector<6x8x8xf32>
    %cst_24 = arith.constant dense<0.000000e+00> : vector<6x8xf32>
    %43 = vector.multi_reduction <add>, %42, %cst_24 [2] : vector<6x8x8xf32> to vector<6x8xf32>
    %44 = vector.shape_cast %43 : vector<6x8xf32> to vector<6x8x1xf32>
    %45 = tpu.reciprocal %44 {approx = true} : vector<6x8x1xf32> -> vector<6x8x1xf32>
    %46 = vector.broadcast %45 : vector<6x8x1xf32> to vector<6x8x8xf32>
    %47 = arith.mulf %42, %46 : vector<6x8x8xf32>
    "tpu.trace_start"() <{level = 10 : i32, message = "gqk,gkd->gqd"}> : () -> ()
    %cst_25 = arith.constant dense<0.000000e+00> : vector<6x8x3xf32>
    %48 = tpu.matmul %47, %36, %cst_25 {dimension_numbers = #tpu.dot_dimension_numbers<[2], [1], [1], [2], [0, 0, 0, 1, 1, 2], [0], [0]>} : vector<6x8x8xf32>, vector<6x8x3xf32>, vector<6x8x3xf32> -> vector<6x8x3xf32>
    "tpu.trace_stop"() : () -> ()
    %c0_26 = arith.constant 0 : index
    %c0_27 = arith.constant 0 : index
    %c0_28 = arith.constant 0 : index
    %49 = vector.load %arg5[%c0_26, %c0_27, %c0_28] : memref<6x3x3xf32, #tpu.memory_space<vmem>>, vector<6x3x3xf32>
    "tpu.trace_start"() <{level = 10 : i32, message = "gsd,gdo->gso"}> : () -> ()
    %cst_29 = arith.constant dense<0.000000e+00> : vector<6x8x3xf32>
    %50 = tpu.matmul %48, %49, %cst_29 {dimension_numbers = #tpu.dot_dimension_numbers<[2], [1], [1], [2], [0, 0, 0, 1, 1, 2], [0], [0]>} : vector<6x8x3xf32>, vector<6x3x3xf32>, vector<6x8x3xf32> -> vector<6x8x3xf32>
    "tpu.trace_stop"() : () -> ()
    %51 = vector.shape_cast %50 : vector<6x8x3xf32> to vector<3x2x8x3xf32>
    %cst_30 = arith.constant dense<0.000000e+00> : vector<2x8x3xf32>
    %52 = vector.multi_reduction <add>, %51, %cst_30 [0] : vector<3x2x8x3xf32> to vector<2x8x3xf32>
    %53 = vector.shape_cast %52 : vector<2x8x3xf32> to vector<16x3xf32>
    %54 = arith.addf %25, %53 : vector<16x3xf32>
    %c0_31 = arith.constant 0 : index
    %c0_32 = arith.constant 0 : index
    %55 = vector.load %arg8[%c0_31, %c0_32] : memref<1x3xf32, #tpu.memory_space<vmem>>, vector<1x3xf32>
    %c0_33 = arith.constant 0 : index
    %c0_34 = arith.constant 0 : index
    %56 = vector.load %arg9[%c0_33, %c0_34] : memref<1x3xf32, #tpu.memory_space<vmem>>, vector<1x3xf32>
    %cst_35 = arith.constant dense<0.000000e+00> : vector<16xf32>
    %57 = vector.multi_reduction <add>, %54, %cst_35 [1] : vector<16x3xf32> to vector<16xf32>
    %58 = vector.shape_cast %57 : vector<16xf32> to vector<16x1xf32>
    %cst_36 = arith.constant 3.000000e+00 : f32
    %59 = vector.broadcast %cst_36 : f32 to vector<16x1xf32>
    %60 = arith.divf %58, %59 : vector<16x1xf32>
    %61 = vector.broadcast %60 : vector<16x1xf32> to vector<16x3xf32>
    %62 = arith.subf %54, %61 : vector<16x3xf32>
    %63 = arith.mulf %62, %62 : vector<16x3xf32>
    %cst_37 = arith.constant dense<0.000000e+00> : vector<16xf32>
    %64 = vector.multi_reduction <add>, %63, %cst_37 [1] : vector<16x3xf32> to vector<16xf32>
    %65 = vector.shape_cast %64 : vector<16xf32> to vector<16x1xf32>
    %cst_38 = arith.constant 3.000000e+00 : f32
    %66 = vector.broadcast %cst_38 : f32 to vector<16x1xf32>
    %67 = arith.divf %65, %66 : vector<16x1xf32>
    %68 = vector.broadcast %60 : vector<16x1xf32> to vector<16x3xf32>
    %69 = arith.subf %54, %68 : vector<16x3xf32>
    %cst_39 = arith.constant 9.99999974E-6 : f32
    %70 = vector.broadcast %cst_39 : f32 to vector<16x1xf32>
    %71 = arith.addf %67, %70 : vector<16x1xf32>
    %72 = math.rsqrt %71 : vector<16x1xf32>
    %73 = vector.broadcast %72 : vector<16x1xf32> to vector<16x3xf32>
    %74 = arith.mulf %69, %73 : vector<16x3xf32>
    %75 = vector.broadcast %55 : vector<1x3xf32> to vector<16x3xf32>
    %76 = arith.mulf %74, %75 : vector<16x3xf32>
    %77 = vector.broadcast %56 : vector<1x3xf32> to vector<16x3xf32>
    %78 = arith.addf %76, %77 : vector<16x3xf32>
    %c0_40 = arith.constant 0 : index
    %c0_41 = arith.constant 0 : index
    %79 = vector.load %arg10[%c0_40, %c0_41] : memref<3x9xf32, #tpu.memory_space<vmem>>, vector<3x9xf32>
    %80 = vector.extract_strided_slice %78 {offsets = [0, 0], sizes = [16, 1], strides = [1, 1]} : vector<16x3xf32> to vector<16x1xf32>
    %81 = vector.extract_strided_slice %79 {offsets = [0, 0], sizes = [1, 9], strides = [1, 1]} : vector<3x9xf32> to vector<1x9xf32>
    %82 = vector.broadcast %80 : vector<16x1xf32> to vector<16x9xf32>
    %83 = vector.broadcast %81 : vector<1x9xf32> to vector<16x9xf32>
    %84 = arith.mulf %82, %83 : vector<16x9xf32>
    %85 = vector.extract_strided_slice %78 {offsets = [0, 1], sizes = [16, 1], strides = [1, 1]} : vector<16x3xf32> to vector<16x1xf32>
    %86 = vector.extract_strided_slice %79 {offsets = [1, 0], sizes = [1, 9], strides = [1, 1]} : vector<3x9xf32> to vector<1x9xf32>
    %87 = vector.broadcast %85 : vector<16x1xf32> to vector<16x9xf32>
    %88 = vector.broadcast %86 : vector<1x9xf32> to vector<16x9xf32>
    %89 = arith.mulf %87, %88 : vector<16x9xf32>
    %90 = arith.addf %84, %89 : vector<16x9xf32>
    %91 = vector.extract_strided_slice %78 {offsets = [0, 2], sizes = [16, 1], strides = [1, 1]} : vector<16x3xf32> to vector<16x1xf32>
    %92 = vector.extract_strided_slice %79 {offsets = [2, 0], sizes = [1, 9], strides = [1, 1]} : vector<3x9xf32> to vector<1x9xf32>
    %93 = vector.broadcast %91 : vector<16x1xf32> to vector<16x9xf32>
    %94 = vector.broadcast %92 : vector<1x9xf32> to vector<16x9xf32>
    %95 = arith.mulf %93, %94 : vector<16x9xf32>
    %96 = arith.addf %90, %95 : vector<16x9xf32>
    %c0_42 = arith.constant 0 : index
    %c0_43 = arith.constant 0 : index
    %97 = vector.load %arg11[%c0_42, %c0_43] : memref<1x9xf32, #tpu.memory_space<vmem>>, vector<1x9xf32>
    %98 = vector.broadcast %97 : vector<1x9xf32> to vector<16x9xf32>
    %99 = arith.addf %96, %98 : vector<16x9xf32>
    %cst_44 = arith.constant 0.000000e+00 : f32
    %100 = vector.broadcast %cst_44 : f32 to vector<16x9xf32>
    %101 = arith.maximumf %99, %100 : vector<16x9xf32>
    %c0_45 = arith.constant 0 : index
    %c0_46 = arith.constant 0 : index
    %102 = vector.load %arg12[%c0_45, %c0_46] : memref<9x3xf32, #tpu.memory_space<vmem>>, vector<9x3xf32>
    %103 = vector.extract_strided_slice %101 {offsets = [0, 0], sizes = [16, 1], strides = [1, 1]} : vector<16x9xf32> to vector<16x1xf32>
    %104 = vector.extract_strided_slice %102 {offsets = [0, 0], sizes = [1, 3], strides = [1, 1]} : vector<9x3xf32> to vector<1x3xf32>
    %105 = vector.broadcast %103 : vector<16x1xf32> to vector<16x3xf32>
    %106 = vector.broadcast %104 : vector<1x3xf32> to vector<16x3xf32>
    %107 = arith.mulf %105, %106 : vector<16x3xf32>
    %108 = vector.extract_strided_slice %101 {offsets = [0, 1], sizes = [16, 1], strides = [1, 1]} : vector<16x9xf32> to vector<16x1xf32>
    %109 = vector.extract_strided_slice %102 {offsets = [1, 0], sizes = [1, 3], strides = [1, 1]} : vector<9x3xf32> to vector<1x3xf32>
    %110 = vector.broadcast %108 : vector<16x1xf32> to vector<16x3xf32>
    %111 = vector.broadcast %109 : vector<1x3xf32> to vector<16x3xf32>
    %112 = arith.mulf %110, %111 : vector<16x3xf32>
    %113 = arith.addf %107, %112 : vector<16x3xf32>
    %114 = vector.extract_strided_slice %101 {offsets = [0, 2], sizes = [16, 1], strides = [1, 1]} : vector<16x9xf32> to vector<16x1xf32>
    %115 = vector.extract_strided_slice %102 {offsets = [2, 0], sizes = [1, 3], strides = [1, 1]} : vector<9x3xf32> to vector<1x3xf32>
    %116 = vector.broadcast %114 : vector<16x1xf32> to vector<16x3xf32>
    %117 = vector.broadcast %115 : vector<1x3xf32> to vector<16x3xf32>
    %118 = arith.mulf %116, %117 : vector<16x3xf32>
    %119 = arith.addf %113, %118 : vector<16x3xf32>
    %120 = vector.extract_strided_slice %101 {offsets = [0, 3], sizes = [16, 1], strides = [1, 1]} : vector<16x9xf32> to vector<16x1xf32>
    %121 = vector.extract_strided_slice %102 {offsets = [3, 0], sizes = [1, 3], strides = [1, 1]} : vector<9x3xf32> to vector<1x3xf32>
    %122 = vector.broadcast %120 : vector<16x1xf32> to vector<16x3xf32>
    %123 = vector.broadcast %121 : vector<1x3xf32> to vector<16x3xf32>
    %124 = arith.mulf %122, %123 : vector<16x3xf32>
    %125 = arith.addf %119, %124 : vector<16x3xf32>
    %126 = vector.extract_strided_slice %101 {offsets = [0, 4], sizes = [16, 1], strides = [1, 1]} : vector<16x9xf32> to vector<16x1xf32>
    %127 = vector.extract_strided_slice %102 {offsets = [4, 0], sizes = [1, 3], strides = [1, 1]} : vector<9x3xf32> to vector<1x3xf32>
    %128 = vector.broadcast %126 : vector<16x1xf32> to vector<16x3xf32>
    %129 = vector.broadcast %127 : vector<1x3xf32> to vector<16x3xf32>
    %130 = arith.mulf %128, %129 : vector<16x3xf32>
    %131 = arith.addf %125, %130 : vector<16x3xf32>
    %132 = vector.extract_strided_slice %101 {offsets = [0, 5], sizes = [16, 1], strides = [1, 1]} : vector<16x9xf32> to vector<16x1xf32>
    %133 = vector.extract_strided_slice %102 {offsets = [5, 0], sizes = [1, 3], strides = [1, 1]} : vector<9x3xf32> to vector<1x3xf32>
    %134 = vector.broadcast %132 : vector<16x1xf32> to vector<16x3xf32>
    %135 = vector.broadcast %133 : vector<1x3xf32> to vector<16x3xf32>
    %136 = arith.mulf %134, %135 : vector<16x3xf32>
    %137 = arith.addf %131, %136 : vector<16x3xf32>
    %138 = vector.extract_strided_slice %101 {offsets = [0, 6], sizes = [16, 1], strides = [1, 1]} : vector<16x9xf32> to vector<16x1xf32>
    %139 = vector.extract_strided_slice %102 {offsets = [6, 0], sizes = [1, 3], strides = [1, 1]} : vector<9x3xf32> to vector<1x3xf32>
    %140 = vector.broadcast %138 : vector<16x1xf32> to vector<16x3xf32>
    %141 = vector.broadcast %139 : vector<1x3xf32> to vector<16x3xf32>
    %142 = arith.mulf %140, %141 : vector<16x3xf32>
    %143 = arith.addf %137, %142 : vector<16x3xf32>
    %144 = vector.extract_strided_slice %101 {offsets = [0, 7], sizes = [16, 1], strides = [1, 1]} : vector<16x9xf32> to vector<16x1xf32>
    %145 = vector.extract_strided_slice %102 {offsets = [7, 0], sizes = [1, 3], strides = [1, 1]} : vector<9x3xf32> to vector<1x3xf32>
    %146 = vector.broadcast %144 : vector<16x1xf32> to vector<16x3xf32>
    %147 = vector.broadcast %145 : vector<1x3xf32> to vector<16x3xf32>
    %148 = arith.mulf %146, %147 : vector<16x3xf32>
    %149 = arith.addf %143, %148 : vector<16x3xf32>
    %150 = vector.extract_strided_slice %101 {offsets = [0, 8], sizes = [16, 1], strides = [1, 1]} : vector<16x9xf32> to vector<16x1xf32>
    %151 = vector.extract_strided_slice %102 {offsets = [8, 0], sizes = [1, 3], strides = [1, 1]} : vector<9x3xf32> to vector<1x3xf32>
    %152 = vector.broadcast %150 : vector<16x1xf32> to vector<16x3xf32>
    %153 = vector.broadcast %151 : vector<1x3xf32> to vector<16x3xf32>
    %154 = arith.mulf %152, %153 : vector<16x3xf32>
    %155 = arith.addf %149, %154 : vector<16x3xf32>
    %c0_47 = arith.constant 0 : index
    %c0_48 = arith.constant 0 : index
    %156 = vector.load %arg13[%c0_47, %c0_48] : memref<1x3xf32, #tpu.memory_space<vmem>>, vector<1x3xf32>
    %157 = vector.broadcast %156 : vector<1x3xf32> to vector<16x3xf32>
    %158 = arith.addf %155, %157 : vector<16x3xf32>
    %159 = arith.addf %78, %158 : vector<16x3xf32>
    %160 = vector.shape_cast %159 : vector<16x3xf32> to vector<2x8x3xf32>
    %c0_49 = arith.constant 0 : index
    %c0_50 = arith.constant 0 : index
    %c0_51 = arith.constant 0 : index
    %161 = vector.load %arg14[%c0_49, %c0_50, %c0_51] : memref<2x8x3xf32, #tpu.memory_space<vmem>>, vector<2x8x3xf32>
    tpu.vector_store %arg14[%c0_49, %c0_50, %c0_51], %160 {strides = array<i32>} : memref<2x8x3xf32, #tpu.memory_space<vmem>>, vector<2x8x3xf32>,
    return
  }
  func.func @transform_0(%arg0: i32) -> (i32, i32, i32) {
    %c0_i32 = arith.constant 0 : i32
    %c0_i32_0 = arith.constant 0 : i32
    %c0_i32_1 = arith.constant 0 : i32
    %c0_i32_2 = arith.constant 0 : i32
    return %c0_i32, %c0_i32_0, %c0_i32_1 : i32, i32, i32
  }
  func.func @transform_1(%arg0: i32) -> (i32, i32, i32) {
    %c0_i32 = arith.constant 0 : i32
    %c0_i32_0 = arith.constant 0 : i32
    %c0_i32_1 = arith.constant 0 : i32
    %c0_i32_2 = arith.constant 0 : i32
    return %c0_i32, %c0_i32_0, %c0_i32_1 : i32, i32, i32
  }
  func.func @transform_2(%arg0: i32) -> (i32, i32, i32) {
    %c0_i32 = arith.constant 0 : i32
    %c0_i32_0 = arith.constant 0 : i32
    %c0_i32_1 = arith.constant 0 : i32
    %c0_i32_2 = arith.constant 0 : i32
    return %c0_i32, %c0_i32_0, %c0_i32_1 : i32, i32, i32
  }
  func.func @transform_3(%arg0: i32) -> (i32, i32, i32) {
    %c0_i32 = arith.constant 0 : i32
    %c0_i32_0 = arith.constant 0 : i32
    %c0_i32_1 = arith.constant 0 : i32
    %c0_i32_2 = arith.constant 0 : i32
    return %c0_i32, %c0_i32_0, %c0_i32_1 : i32, i32, i32
  }
  func.func @transform_4(%arg0: i32) -> (i32, i32, i32) {
    %c0_i32 = arith.constant 0 : i32
    %c0_i32_0 = arith.constant 0 : i32
    %c0_i32_1 = arith.constant 0 : i32
    %c0_i32_2 = arith.constant 0 : i32
    return %c0_i32, %c0_i32_0, %c0_i32_1 : i32, i32, i32
  }
  func.func @transform_5(%arg0: i32) -> (i32, i32) {
    %c0_i32 = arith.constant 0 : i32
    %c0_i32_0 = arith.constant 0 : i32
    %c0_i32_1 = arith.constant 0 : i32
    return %c0_i32, %c0_i32_0 : i32, i32
  }
  func.func @transform_6(%arg0: i32) -> (i32, i32) {
    %c0_i32 = arith.constant 0 : i32
    %c0_i32_0 = arith.constant 0 : i32
    %c0_i32_1 = arith.constant 0 : i32
    return %c0_i32, %c0_i32_0 : i32, i32
  }
  func.func @transform_7(%arg0: i32) -> (i32, i32) {
    %c0_i32 = arith.constant 0 : i32
    %c0_i32_0 = arith.constant 0 : i32
    %c0_i32_1 = arith.constant 0 : i32
    return %c0_i32, %c0_i32_0 : i32, i32
  }
  func.func @transform_8(%arg0: i32) -> (i32, i32) {
    %c0_i32 = arith.constant 0 : i32
    %c0_i32_0 = arith.constant 0 : i32
    %c0_i32_1 = arith.constant 0 : i32
    return %c0_i32, %c0_i32_0 : i32, i32
  }
  func.func @transform_9(%arg0: i32) -> (i32, i32) {
    %c0_i32 = arith.constant 0 : i32
    %c0_i32_0 = arith.constant 0 : i32
    %c0_i32_1 = arith.constant 0 : i32
    return %c0_i32, %c0_i32_0 : i32, i32
  }
  func.func @transform_10(%arg0: i32) -> (i32, i32) {
    %c0_i32 = arith.constant 0 : i32
    %c0_i32_0 = arith.constant 0 : i32
    %c0_i32_1 = arith.constant 0 : i32
    return %c0_i32, %c0_i32_0 : i32, i32
  }
  func.func @transform_11(%arg0: i32) -> (i32, i32) {
    %c0_i32 = arith.constant 0 : i32
    %c0_i32_0 = arith.constant 0 : i32
    %c0_i32_1 = arith.constant 0 : i32
    return %c0_i32, %c0_i32_0 : i32, i32
  }
  func.func @transform_12(%arg0: i32) -> (i32, i32) {
    %c0_i32 = arith.constant 0 : i32
    %c0_i32_0 = arith.constant 0 : i32
    %c0_i32_1 = arith.constant 0 : i32
    return %c0_i32, %c0_i32_0 : i32, i32
  }
  func.func @transform_13(%arg0: i32) -> (i32, i32, i32) {
    %c0_i32 = arith.constant 0 : i32
    %c0_i32_0 = arith.constant 0 : i32
    %c0_i32_1 = arith.constant 0 : i32
    %c0_i32_2 = arith.constant 0 : i32
    return %c0_i32, %c0_i32_0, %c0_i32_1 : i32, i32, i32
  }
}

</mosaic_0001>

<llo_original>
// kernel: tpu_custom_call.1
$region0: #{tpu_custom_call.1}
  #allocation0 [shape = 'u32[]', space=smem, size = 0x4, offset = 0x4, fixed_abs, tag = 'smem constant byte address 0x4 - core index']
  #allocation1 [shape = 'u32[72,128]{1,0:T(1,128)}', space=vmem, size = 0x9000, scoped, tag = 'internal scratch']
  %s0 = inlined_call_operand.vmem [shape: f32[2,8,3], index: 0, kind: input, shape index: {}]
  %s1 = inlined_call_operand.vmem [shape: f32[6,3,3], index: 1, kind: input, shape index: {}]
  %s2 = inlined_call_operand.vmem [shape: f32[6,3,3], index: 2, kind: input, shape index: {}]
  %s3 = inlined_call_operand.vmem [shape: f32[6,3,3], index: 3, kind: input, shape index: {}]
  %s4 = inlined_call_operand.vmem [shape: f32[6,3,3], index: 4, kind: input, shape index: {}]
  %s5 = inlined_call_operand.vmem [shape: f32[1,3], index: 5, kind: input, shape index: {}]
  %s6 = inlined_call_operand.vmem [shape: f32[1,3], index: 6, kind: input, shape index: {}]
  %s7 = inlined_call_operand.vmem [shape: f32[1,3], index: 7, kind: input, shape index: {}]
  %s8 = inlined_call_operand.vmem [shape: f32[1,3], index: 8, kind: input, shape index: {}]
  %s9 = inlined_call_operand.vmem [shape: f32[3,9], index: 9, kind: input, shape index: {}]
  %s10 = inlined_call_operand.vmem [shape: f32[1,9], index: 10, kind: input, shape index: {}]
  %s11 = inlined_call_operand.vmem [shape: f32[9,3], index: 11, kind: input, shape index: {}]
  %s12 = inlined_call_operand.vmem [shape: f32[1,3], index: 12, kind: input, shape index: {}]
  %s13 = inlined_call_operand.vmem [shape: f32[2,8,3], index: 13, kind: output, shape index: {}]
  %s14 = sld [smem:[#allocation0]]
  $region62: #{tpu_custom_call.1} parent=0
    _
  %s16 = ssub.s32 1, %s14
  %s17 = scalar_select 0, %s16, %s14
  // Predicated region
  $region2: #{tpu_custom_call.1} parent=0 // pred_check
    _
  $region3: #{tpu_custom_call.1} parent=0 // pred_check_branch
    %19 = sbr.rel (0) target = $region5
  $region4: #{tpu_custom_call.1} parent=0 // pred_region
    _
  $region5: #{tpu_custom_call.1} parent=0 // pred_fallthru
    _
  // Predicated region
  $region6: #{tpu_custom_call.1} parent=0 // pred_check
    _
  $region7: #{tpu_custom_call.1} parent=0 // pred_check_branch
    %21 = sbr.rel (0) target = $region9
  $region8: #{tpu_custom_call.1} parent=0 // pred_region
    _
  $region9: #{tpu_custom_call.1} parent=0 // pred_fallthru
    _
  // Predicated region
  $region10: #{tpu_custom_call.1} parent=0 // pred_check
    _
  $region11: #{tpu_custom_call.1} parent=0 // pred_check_branch
    %23 = sbr.rel (0) target = $region13
  $region12: #{tpu_custom_call.1} parent=0 // pred_region
    _
  $region13: #{tpu_custom_call.1} parent=0 // pred_fallthru
    _
  // Predicated region
  $region14: #{tpu_custom_call.1} parent=0 // pred_check
    _
  $region15: #{tpu_custom_call.1} parent=0 // pred_check_branch
    %25 = sbr.rel (0) target = $region17
  $region16: #{tpu_custom_call.1} parent=0 // pred_region
    _
  $region17: #{tpu_custom_call.1} parent=0 // pred_fallthru
    _
  // Predicated region
  $region18: #{tpu_custom_call.1} parent=0 // pred_check
    _
  $region19: #{tpu_custom_call.1} parent=0 // pred_check_branch
    %27 = sbr.rel (0) target = $region21
  $region20: #{tpu_custom_call.1} parent=0 // pred_region
    _
  $region21: #{tpu_custom_call.1} parent=0 // pred_fallthru
    _
  // Predicated region
  $region22: #{tpu_custom_call.1} parent=0 // pred_check
    _
  $region23: #{tpu_custom_call.1} parent=0 // pred_check_branch
    %29 = sbr.rel (0) target = $region25
  $region24: #{tpu_custom_call.1} parent=0 // pred_region
    _
  $region25: #{tpu_custom_call.1} parent=0 // pred_fallthru
    _
  // Predicated region
  $region26: #{tpu_custom_call.1} parent=0 // pred_check
    _
  $region27: #{tpu_custom_call.1} parent=0 // pred_check_branch
    %31 = sbr.rel (0) target = $region29
  $region28: #{tpu_custom_call.1} parent=0 // pred_region
    _
  $region29: #{tpu_custom_call.1} parent=0 // pred_fallthru
    _
  // Predicated region
  $region30: #{tpu_custom_call.1} parent=0 // pred_check
    _
  $region31: #{tpu_custom_call.1} parent=0 // pred_check_branch
    %33 = sbr.rel (0) target = $region33
  $region32: #{tpu_custom_call.1} parent=0 // pred_region
    _
  $region33: #{tpu_custom_call.1} parent=0 // pred_fallthru
    _
  // Predicated region
  $region34: #{tpu_custom_call.1} parent=0 // pred_check
    _
  $region35: #{tpu_custom_call.1} parent=0 // pred_check_branch
    %35 = sbr.rel (0) target = $region37
  $region36: #{tpu_custom_call.1} parent=0 // pred_region
    _
  $region37: #{tpu_custom_call.1} parent=0 // pred_fallthru
    _
  // Predicated region
  $region38: #{tpu_custom_call.1} parent=0 // pred_check
    _
  $region39: #{tpu_custom_call.1} parent=0 // pred_check_branch
    %37 = sbr.rel (0) target = $region41
  $region40: #{tpu_custom_call.1} parent=0 // pred_region
    _
  $region41: #{tpu_custom_call.1} parent=0 // pred_fallthru
    _
  // Predicated region
  $region42: #{tpu_custom_call.1} parent=0 // pred_check
    _
  $region43: #{tpu_custom_call.1} parent=0 // pred_check_branch
    %39 = sbr.rel (0) target = $region45
  $region44: #{tpu_custom_call.1} parent=0 // pred_region
    _
  $region45: #{tpu_custom_call.1} parent=0 // pred_fallthru
    _
  // Predicated region
  $region46: #{tpu_custom_call.1} parent=0 // pred_check
    _
  $region47: #{tpu_custom_call.1} parent=0 // pred_check_branch
    %41 = sbr.rel (0) target = $region49
  $region48: #{tpu_custom_call.1} parent=0 // pred_region
    _
  $region49: #{tpu_custom_call.1} parent=0 // pred_fallthru
    _
  // Predicated region
  $region50: #{tpu_custom_call.1} parent=0 // pred_check
    _
  $region51: #{tpu_custom_call.1} parent=0 // pred_check_branch
    %43 = sbr.rel (0) target = $region53
  $region52: #{tpu_custom_call.1} parent=0 // pred_region
    _
  $region53: #{tpu_custom_call.1} parent=0 // pred_fallthru
    _
  %v44 = vld [vmem:[%s0] sm:$0xff]
  %v45 = vld [vmem:[%s0 + $0x8] sm:$0xff]
  %v46 = vld [vmem:[%s5] sm:$0x1]
  %v47 = vld [vmem:[%s6] sm:$0x1]
  %vm48 = vcmask 23552
  %v49 = vsel %vm48, %v44, 0.0
  %50 = vadd.xlane.f32.xlu0 %v49
  %v51 = vpop.xlane.xlu0 %50
  %v52 = vsel %vm48, %v45, 0.0
  %53 = vadd.xlane.f32.xlu0 %v52
  %v54 = vpop.xlane.xlu0 %53
  %v55 = vrcp.pop 3.0
  %v56 = vmul.f32 3.0, %v55
  %v57 = vsub.f32 1.0, %v56
  %v58 = vmul.f32 %v55, %v57
  %v59 = vadd.f32 %v55, %v58
  %vm60 = vweird.f32 %v55
  %v61 = vsel %vm60, %v55, %v59
  %v62 = vmul.f32 %v51, %v61
  %v63 = vmul.f32 %v54, %v61
  %v64 = vsub.f32 %v44, %v62
  %v65 = vsub.f32 %v45, %v63
  %v66 = vmul.f32 %v64, %v64
  %v67 = vmul.f32 %v65, %v65
  %v68 = vsel %vm48, %v66, 0.0
  %69 = vadd.xlane.f32.xlu0 %v68
  %v70 = vpop.xlane.xlu0 %69
  %v71 = vsel %vm48, %v67, 0.0
  %72 = vadd.xlane.f32.xlu0 %v71
  %v73 = vpop.xlane.xlu0 %72
  %v74 = vmul.f32 %v70, %v61
  %v75 = vmul.f32 %v73, %v61
  %v76 = vadd.f32 %v74, 1e-05
  %v77 = vadd.f32 %v75, 1e-05
  %v78 = vrsqrt.pop %v76
  %v79 = vmul.f32 %v78, %v76
  %v80 = vmul.f32 %v79, %v78
  %v81 = vmul.f32 0.5, %v80
  %v82 = vsub.f32 1.5, %v81
  %v83 = vmul.f32 %v78, %v82
  %vm84 = vweird.f32 %v76
  %vm85 = vweird.f32 %v78
  %vm86 = vmor %vm84, %vm85
  %v87 = vsel %vm86, %v78, %v83
  %v88 = vrsqrt.pop %v77
  %v89 = vmul.f32 %v88, %v77
  %v90 = vmul.f32 %v89, %v88
  %v91 = vmul.f32 0.5, %v90
  %v92 = vsub.f32 1.5, %v91
  %v93 = vmul.f32 %v88, %v92
  %vm94 = vweird.f32 %v77
  %vm95 = vweird.f32 %v88
  %vm96 = vmor %vm94, %vm95
  %v97 = vsel %vm96, %v88, %v93
  %v98 = vmul.f32 %v64, %v87
  %v99 = vmul.f32 %v65, %v97
  %v101 = vperm.slane %v46, 0
  %v103 = vmul.f32 %v98, %v101
  %v104 = vmul.f32 %v99, %v101
  %v106 = vperm.slane %v47, 0
  %v108 = vadd.f32 %v103, %v106
  %v109 = vadd.f32 %v104, %v106
  %v110 = vld [vmem:[%s1] sm:$0x7]
  %v111 = vld [vmem:[%s1 + $0x4] sm:$0x7]
  %v112 = vld [vmem:[%s1 + $0x8] sm:$0x7]
  %v113 = vld [vmem:[%s1 + $0xc] sm:$0x7]
  %v114 = vld [vmem:[%s1 + $0x10] sm:$0x7]
  %v115 = vld [vmem:[%s1 + $0x14] sm:$0x7]
  %v117 = vsel %vm48, %v108, 0
  %vm119 = vcmask 1042432
  %v121 = vsel %vm119, %v110, 0
  %123 = vmatpush.msra.mxu0 0.0
  %124 = vmatpush.msra.mxu0 0.0
  %125 = vmatpush.msra.mxu0 0.0
  %126 = vmatpush.msra.mxu0 0.0
  %127 = vmatpush.msra.mxu0 0.0
  %128 = vmatpush.msra.mxu0 0.0
  %129 = vmatpush.msra.mxu0 0.0
  %130 = vmatpush.msra.mxu0 0.0
  %131 = vmatpush.msra.mxu0 0.0
  %132 = vmatpush.msra.mxu0 0.0
  %133 = vmatpush.msra.mxu0 0.0
  %134 = vmatpush.msra.mxu0 0.0
  %135 = vmatpush.msra.mxu0 0.0
  %136 = vmatpush.msra.mxu0 0.0
  %137 = vmatpush.msra.mxu0 0.0
  %138 = vmatpush.msra.mxu0 %v121
  %139 = vmatmul.f32.gmra.mxu0 %v117
  %v140 = vpop.f32.mrf.mxu0
  %v141 = vadd.f32 0.0, %v140
  %142 = vdwg.mxu0
  %v144 = vsel %vm48, %v109, 0
  %v147 = vsel %vm119, %v111, 0
  %149 = vmatpush.msra.mxu0 0.0
  %150 = vmatpush.msra.mxu0 0.0
  %151 = vmatpush.msra.mxu0 0.0
  %152 = vmatpush.msra.mxu0 0.0
  %153 = vmatpush.msra.mxu0 0.0
  %154 = vmatpush.msra.mxu0 0.0
  %155 = vmatpush.msra.mxu0 0.0
  %156 = vmatpush.msra.mxu0 0.0
  %157 = vmatpush.msra.mxu0 0.0
  %158 = vmatpush.msra.mxu0 0.0
  %159 = vmatpush.msra.mxu0 0.0
  %160 = vmatpush.msra.mxu0 0.0
  %161 = vmatpush.msra.mxu0 0.0
  %162 = vmatpush.msra.mxu0 0.0
  %163 = vmatpush.msra.mxu0 0.0
  %164 = vmatpush.msra.mxu0 %v147
  %165 = vmatmul.f32.gmra.mxu0 %v144
  %v166 = vpop.f32.mrf.mxu0
  %v167 = vadd.f32 0.0, %v166
  %168 = vdwg.mxu0
  %v170 = vsel %vm119, %v112, 0
  %172 = vmatpush.msra.mxu0 0.0
  %173 = vmatpush.msra.mxu0 0.0
  %174 = vmatpush.msra.mxu0 0.0
  %175 = vmatpush.msra.mxu0 0.0
  %176 = vmatpush.msra.mxu0 0.0
  %177 = vmatpush.msra.mxu0 0.0
  %178 = vmatpush.msra.mxu0 0.0
  %179 = vmatpush.msra.mxu0 0.0
  %180 = vmatpush.msra.mxu0 0.0
  %181 = vmatpush.msra.mxu0 0.0
  %182 = vmatpush.msra.mxu0 0.0
  %183 = vmatpush.msra.mxu0 0.0
  %184 = vmatpush.msra.mxu0 0.0
  %185 = vmatpush.msra.mxu0 0.0
  %186 = vmatpush.msra.mxu0 0.0
  %187 = vmatpush.msra.mxu0 %v170
  %188 = vmatmul.f32.gmra.mxu0 %v117
  %v189 = vpop.f32.mrf.mxu0
  %v190 = vadd.f32 0.0, %v189
  %191 = vdwg.mxu0
  %v193 = vsel %vm119, %v113, 0
  %195 = vmatpush.msra.mxu0 0.0
  %196 = vmatpush.msra.mxu0 0.0
  %197 = vmatpush.msra.mxu0 0.0
  %198 = vmatpush.msra.mxu0 0.0
  %199 = vmatpush.msra.mxu0 0.0
  %200 = vmatpush.msra.mxu0 0.0
  %201 = vmatpush.msra.mxu0 0.0
  %202 = vmatpush.msra.mxu0 0.0
  %203 = vmatpush.msra.mxu0 0.0
  %204 = vmatpush.msra.mxu0 0.0
  %205 = vmatpush.msra.mxu0 0.0
  %206 = vmatpush.msra.mxu0 0.0
  %207 = vmatpush.msra.mxu0 0.0
  %208 = vmatpush.msra.mxu0 0.0
  %209 = vmatpush.msra.mxu0 0.0
  %210 = vmatpush.msra.mxu0 %v193
  %211 = vmatmul.f32.gmra.mxu0 %v144
  %v212 = vpop.f32.mrf.mxu0
  %v213 = vadd.f32 0.0, %v212
  %214 = vdwg.mxu0
  %v216 = vsel %vm119, %v114, 0
  %218 = vmatpush.msra.mxu0 0.0
  %219 = vmatpush.msra.mxu0 0.0
  %220 = vmatpush.msra.mxu0 0.0
  %221 = vmatpush.msra.mxu0 0.0
  %222 = vmatpush.msra.mxu0 0.0
  %223 = vmatpush.msra.mxu0 0.0
  %224 = vmatpush.msra.mxu0 0.0
  %225 = vmatpush.msra.mxu0 0.0
  %226 = vmatpush.msra.mxu0 0.0
  %227 = vmatpush.msra.mxu0 0.0
  %228 = vmatpush.msra.mxu0 0.0
  %229 = vmatpush.msra.mxu0 0.0
  %230 = vmatpush.msra.mxu0 0.0
  %231 = vmatpush.msra.mxu0 0.0
  %232 = vmatpush.msra.mxu0 0.0
  %233 = vmatpush.msra.mxu0 %v216
  %234 = vmatmul.f32.gmra.mxu0 %v117
  %v235 = vpop.f32.mrf.mxu0
  %v236 = vadd.f32 0.0, %v235
  %237 = vdwg.mxu0
  %v239 = vsel %vm119, %v115, 0
  %241 = vmatpush.msra.mxu0 0.0
  %242 = vmatpush.msra.mxu0 0.0
  %243 = vmatpush.msra.mxu0 0.0
  %244 = vmatpush.msra.mxu0 0.0
  %245 = vmatpush.msra.mxu0 0.0
  %246 = vmatpush.msra.mxu0 0.0
  %247 = vmatpush.msra.mxu0 0.0
  %248 = vmatpush.msra.mxu0 0.0
  %249 = vmatpush.msra.mxu0 0.0
  %250 = vmatpush.msra.mxu0 0.0
  %251 = vmatpush.msra.mxu0 0.0
  %252 = vmatpush.msra.mxu0 0.0
  %253 = vmatpush.msra.mxu0 0.0
  %254 = vmatpush.msra.mxu0 0.0
  %255 = vmatpush.msra.mxu0 0.0
  %256 = vmatpush.msra.mxu0 %v239
  %257 = vmatmul.f32.gmra.mxu0 %v144
  %v258 = vpop.f32.mrf.mxu0
  %v259 = vadd.f32 0.0, %v258
  %260 = vdwg.mxu0
  %v261 = vld [vmem:[%s2] sm:$0x7]
  %v262 = vld [vmem:[%s2 + $0x4] sm:$0x7]
  %v263 = vld [vmem:[%s2 + $0x8] sm:$0x7]
  %v264 = vld [vmem:[%s2 + $0xc] sm:$0x7]
  %v265 = vld [vmem:[%s2 + $0x10] sm:$0x7]
  %v266 = vld [vmem:[%s2 + $0x14] sm:$0x7]
  %v268 = vsel %vm119, %v261, 0
  %270 = vmatpush.msra.mxu0 0.0
  %271 = vmatpush.msra.mxu0 0.0
  %272 = vmatpush.msra.mxu0 0.0
  %273 = vmatpush.msra.mxu0 0.0
  %274 = vmatpush.msra.mxu0 0.0
  %275 = vmatpush.msra.mxu0 0.0
  %276 = vmatpush.msra.mxu0 0.0
  %277 = vmatpush.msra.mxu0 0.0
  %278 = vmatpush.msra.mxu0 0.0
  %279 = vmatpush.msra.mxu0 0.0
  %280 = vmatpush.msra.mxu0 0.0
  %281 = vmatpush.msra.mxu0 0.0
  %282 = vmatpush.msra.mxu0 0.0
  %283 = vmatpush.msra.mxu0 0.0
  %284 = vmatpush.msra.mxu0 0.0
  %285 = vmatpush.msra.mxu0 %v268
  %286 = vmatmul.f32.gmra.mxu0 %v117
  %v287 = vpop.f32.mrf.mxu0
  %v288 = vadd.f32 0.0, %v287
  %289 = vdwg.mxu0
  %v291 = vsel %vm119, %v262, 0
  %293 = vmatpush.msra.mxu0 0.0
  %294 = vmatpush.msra.mxu0 0.0
  %295 = vmatpush.msra.mxu0 0.0
  %296 = vmatpush.msra.mxu0 0.0
  %297 = vmatpush.msra.mxu0 0.0
  %298 = vmatpush.msra.mxu0 0.0
  %299 = vmatpush.msra.mxu0 0.0
  %300 = vmatpush.msra.mxu0 0.0
  %301 = vmatpush.msra.mxu0 0.0
  %302 = vmatpush.msra.mxu0 0.0
  %303 = vmatpush.msra.mxu0 0.0
  %304 = vmatpush.msra.mxu0 0.0
  %305 = vmatpush.msra.mxu0 0.0
  %306 = vmatpush.msra.mxu0 0.0
  %307 = vmatpush.msra.mxu0 0.0
  %308 = vmatpush.msra.mxu0 %v291
  %309 = vmatmul.f32.gmra.mxu0 %v144
  %v310 = vpop.f32.mrf.mxu0
  %v311 = vadd.f32 0.0, %v310
  %312 = vdwg.mxu0
  %v314 = vsel %vm119, %v263, 0
  %316 = vmatpush.msra.mxu0 0.0
  %317 = vmatpush.msra.mxu0 0.0
  %318 = vmatpush.msra.mxu0 0.0
  %319 = vmatpush.msra.mxu0 0.0
  %320 = vmatpush.msra.mxu0 0.0
  %321 = vmatpush.msra.mxu0 0.0
  %322 = vmatpush.msra.mxu0 0.0
  %323 = vmatpush.msra.mxu0 0.0
  %324 = vmatpush.msra.mxu0 0.0
  %325 = vmatpush.msra.mxu0 0.0
  %326 = vmatpush.msra.mxu0 0.0
  %327 = vmatpush.msra.mxu0 0.0
  %328 = vmatpush.msra.mxu0 0.0
  %329 = vmatpush.msra.mxu0 0.0
  %330 = vmatpush.msra.mxu0 0.0
  %331 = vmatpush.msra.mxu0 %v314
  %332 = vmatmul.f32.gmra.mxu0 %v117
  %v333 = vpop.f32.mrf.mxu0
  %v334 = vadd.f32 0.0, %v333
  %335 = vdwg.mxu0
  %v337 = vsel %vm119, %v264, 0
  %339 = vmatpush.msra.mxu0 0.0
  %340 = vmatpush.msra.mxu0 0.0
  %341 = vmatpush.msra.mxu0 0.0
  %342 = vmatpush.msra.mxu0 0.0
  %343 = vmatpush.msra.mxu0 0.0
  %344 = vmatpush.msra.mxu0 0.0
  %345 = vmatpush.msra.mxu0 0.0
  %346 = vmatpush.msra.mxu0 0.0
  %347 = vmatpush.msra.mxu0 0.0
  %348 = vmatpush.msra.mxu0 0.0
  %349 = vmatpush.msra.mxu0 0.0
  %350 = vmatpush.msra.mxu0 0.0
  %351 = vmatpush.msra.mxu0 0.0
  %352 = vmatpush.msra.mxu0 0.0
  %353 = vmatpush.msra.mxu0 0.0
  %354 = vmatpush.msra.mxu0 %v337
  %355 = vmatmul.f32.gmra.mxu0 %v144
  %v356 = vpop.f32.mrf.mxu0
  %v357 = vadd.f32 0.0, %v356
  %358 = vdwg.mxu0
  %v360 = vsel %vm119, %v265, 0
  %362 = vmatpush.msra.mxu0 0.0
  %363 = vmatpush.msra.mxu0 0.0
  %364 = vmatpush.msra.mxu0 0.0
  %365 = vmatpush.msra.mxu0 0.0
  %366 = vmatpush.msra.mxu0 0.0
  %367 = vmatpush.msra.mxu0 0.0
  %368 = vmatpush.msra.mxu0 0.0
  %369 = vmatpush.msra.mxu0 0.0
  %370 = vmatpush.msra.mxu0 0.0
  %371 = vmatpush.msra.mxu0 0.0
  %372 = vmatpush.msra.mxu0 0.0
  %373 = vmatpush.msra.mxu0 0.0
  %374 = vmatpush.msra.mxu0 0.0
  %375 = vmatpush.msra.mxu0 0.0
  %376 = vmatpush.msra.mxu0 0.0
  %377 = vmatpush.msra.mxu0 %v360
  %378 = vmatmul.f32.gmra.mxu0 %v117
  %v379 = vpop.f32.mrf.mxu0
  %v380 = vadd.f32 0.0, %v379
  %381 = vdwg.mxu0
  %v383 = vsel %vm119, %v266, 0
  %385 = vmatpush.msra.mxu0 0.0
  %386 = vmatpush.msra.mxu0 0.0
  %387 = vmatpush.msra.mxu0 0.0
  %388 = vmatpush.msra.mxu0 0.0
  %389 = vmatpush.msra.mxu0 0.0
  %390 = vmatpush.msra.mxu0 0.0
  %391 = vmatpush.msra.mxu0 0.0
  %392 = vmatpush.msra.mxu0 0.0
  %393 = vmatpush.msra.mxu0 0.0
  %394 = vmatpush.msra.mxu0 0.0
  %395 = vmatpush.msra.mxu0 0.0
  %396 = vmatpush.msra.mxu0 0.0
  %397 = vmatpush.msra.mxu0 0.0
  %398 = vmatpush.msra.mxu0 0.0
  %399 = vmatpush.msra.mxu0 0.0
  %400 = vmatpush.msra.mxu0 %v383
  %401 = vmatmul.f32.gmra.mxu0 %v144
  %v402 = vpop.f32.mrf.mxu0
  %v403 = vadd.f32 0.0, %v402
  %404 = vdwg.mxu0
  %v405 = vld [vmem:[%s3] sm:$0x7]
  %v406 = vld [vmem:[%s3 + $0x4] sm:$0x7]
  %v407 = vld [vmem:[%s3 + $0x8] sm:$0x7]
  %v408 = vld [vmem:[%s3 + $0xc] sm:$0x7]
  %v409 = vld [vmem:[%s3 + $0x10] sm:$0x7]
  %v410 = vld [vmem:[%s3 + $0x14] sm:$0x7]
  %v412 = vsel %vm119, %v405, 0
  %414 = vmatpush.msra.mxu0 0.0
  %415 = vmatpush.msra.mxu0 0.0
  %416 = vmatpush.msra.mxu0 0.0
  %417 = vmatpush.msra.mxu0 0.0
  %418 = vmatpush.msra.mxu0 0.0
  %419 = vmatpush.msra.mxu0 0.0
  %420 = vmatpush.msra.mxu0 0.0
  %421 = vmatpush.msra.mxu0 0.0
  %422 = vmatpush.msra.mxu0 0.0
  %423 = vmatpush.msra.mxu0 0.0
  %424 = vmatpush.msra.mxu0 0.0
  %425 = vmatpush.msra.mxu0 0.0
  %426 = vmatpush.msra.mxu0 0.0
  %427 = vmatpush.msra.mxu0 0.0
  %428 = vmatpush.msra.mxu0 0.0
  %429 = vmatpush.msra.mxu0 %v412
  %430 = vmatmul.f32.gmra.mxu0 %v117
  %v431 = vpop.f32.mrf.mxu0
  %v432 = vadd.f32 0.0, %v431
  %433 = vdwg.mxu0
  %v435 = vsel %vm119, %v406, 0
  %437 = vmatpush.msra.mxu0 0.0
  %438 = vmatpush.msra.mxu0 0.0
  %439 = vmatpush.msra.mxu0 0.0
  %440 = vmatpush.msra.mxu0 0.0
  %441 = vmatpush.msra.mxu0 0.0
  %442 = vmatpush.msra.mxu0 0.0
  %443 = vmatpush.msra.mxu0 0.0
  %444 = vmatpush.msra.mxu0 0.0
  %445 = vmatpush.msra.mxu0 0.0
  %446 = vmatpush.msra.mxu0 0.0
  %447 = vmatpush.msra.mxu0 0.0
  %448 = vmatpush.msra.mxu0 0.0
  %449 = vmatpush.msra.mxu0 0.0
  %450 = vmatpush.msra.mxu0 0.0
  %451 = vmatpush.msra.mxu0 0.0
  %452 = vmatpush.msra.mxu0 %v435
  %453 = vmatmul.f32.gmra.mxu0 %v144
  %v454 = vpop.f32.mrf.mxu0
  %v455 = vadd.f32 0.0, %v454
  %456 = vdwg.mxu0
  %v458 = vsel %vm119, %v407, 0
  %460 = vmatpush.msra.mxu0 0.0
  %461 = vmatpush.msra.mxu0 0.0
  %462 = vmatpush.msra.mxu0 0.0
  %463 = vmatpush.msra.mxu0 0.0
  %464 = vmatpush.msra.mxu0 0.0
  %465 = vmatpush.msra.mxu0 0.0
  %466 = vmatpush.msra.mxu0 0.0
  %467 = vmatpush.msra.mxu0 0.0
  %468 = vmatpush.msra.mxu0 0.0
  %469 = vmatpush.msra.mxu0 0.0
  %470 = vmatpush.msra.mxu0 0.0
  %471 = vmatpush.msra.mxu0 0.0
  %472 = vmatpush.msra.mxu0 0.0
  %473 = vmatpush.msra.mxu0 0.0
  %474 = vmatpush.msra.mxu0 0.0
  %475 = vmatpush.msra.mxu0 %v458
  %476 = vmatmul.f32.gmra.mxu0 %v117
  %v477 = vpop.f32.mrf.mxu0
  %v478 = vadd.f32 0.0, %v477
  %479 = vdwg.mxu0
  %v481 = vsel %vm119, %v408, 0
  %483 = vmatpush.msra.mxu0 0.0
  %484 = vmatpush.msra.mxu0 0.0
  %485 = vmatpush.msra.mxu0 0.0
  %486 = vmatpush.msra.mxu0 0.0
  %487 = vmatpush.msra.mxu0 0.0
  %488 = vmatpush.msra.mxu0 0.0
  %489 = vmatpush.msra.mxu0 0.0
  %490 = vmatpush.msra.mxu0 0.0
  %491 = vmatpush.msra.mxu0 0.0
  %492 = vmatpush.msra.mxu0 0.0
  %493 = vmatpush.msra.mxu0 0.0
  %494 = vmatpush.msra.mxu0 0.0
  %495 = vmatpush.msra.mxu0 0.0
  %496 = vmatpush.msra.mxu0 0.0
  %497 = vmatpush.msra.mxu0 0.0
  %498 = vmatpush.msra.mxu0 %v481
  %499 = vmatmul.f32.gmra.mxu0 %v144
  %v500 = vpop.f32.mrf.mxu0
  %v501 = vadd.f32 0.0, %v500
  %502 = vdwg.mxu0
  %v504 = vsel %vm119, %v409, 0
  %506 = vmatpush.msra.mxu0 0.0
  %507 = vmatpush.msra.mxu0 0.0
  %508 = vmatpush.msra.mxu0 0.0
  %509 = vmatpush.msra.mxu0 0.0
  %510 = vmatpush.msra.mxu0 0.0
  %511 = vmatpush.msra.mxu0 0.0
  %512 = vmatpush.msra.mxu0 0.0
  %513 = vmatpush.msra.mxu0 0.0
  %514 = vmatpush.msra.mxu0 0.0
  %515 = vmatpush.msra.mxu0 0.0
  %516 = vmatpush.msra.mxu0 0.0
  %517 = vmatpush.msra.mxu0 0.0
  %518 = vmatpush.msra.mxu0 0.0
  %519 = vmatpush.msra.mxu0 0.0
  %520 = vmatpush.msra.mxu0 0.0
  %521 = vmatpush.msra.mxu0 %v504
  %522 = vmatmul.f32.gmra.mxu0 %v117
  %v523 = vpop.f32.mrf.mxu0
  %v524 = vadd.f32 0.0, %v523
  %525 = vdwg.mxu0
  %v527 = vsel %vm119, %v410, 0
  %529 = vmatpush.msra.mxu0 0.0
  %530 = vmatpush.msra.mxu0 0.0
  %531 = vmatpush.msra.mxu0 0.0
  %532 = vmatpush.msra.mxu0 0.0
  %533 = vmatpush.msra.mxu0 0.0
  %534 = vmatpush.msra.mxu0 0.0
  %535 = vmatpush.msra.mxu0 0.0
  %536 = vmatpush.msra.mxu0 0.0
  %537 = vmatpush.msra.mxu0 0.0
  %538 = vmatpush.msra.mxu0 0.0
  %539 = vmatpush.msra.mxu0 0.0
  %540 = vmatpush.msra.mxu0 0.0
  %541 = vmatpush.msra.mxu0 0.0
  %542 = vmatpush.msra.mxu0 0.0
  %543 = vmatpush.msra.mxu0 0.0
  %544 = vmatpush.msra.mxu0 %v527
  %545 = vmatmul.f32.gmra.mxu0 %v144
  %v546 = vpop.f32.mrf.mxu0
  %v547 = vadd.f32 0.0, %v546
  %548 = vdwg.mxu0
  %v550 = vsel %vm48, %v141, 0
  %v553 = vsel %vm48, %v288, 0
  %555 = vmatpush.xpose.msra.mxu0 0.0
  %556 = vmatpush.xpose.msra.mxu0 0.0
  %557 = vmatpush.xpose.msra.mxu0 0.0
  %558 = vmatpush.xpose.msra.mxu0 0.0
  %559 = vmatpush.xpose.msra.mxu0 0.0
  %560 = vmatpush.xpose.msra.mxu0 0.0
  %561 = vmatpush.xpose.msra.mxu0 0.0
  %562 = vmatpush.xpose.msra.mxu0 0.0
  %563 = vmatpush.xpose.msra.mxu0 0.0
  %564 = vmatpush.xpose.msra.mxu0 0.0
  %565 = vmatpush.xpose.msra.mxu0 0.0
  %566 = vmatpush.xpose.msra.mxu0 0.0
  %567 = vmatpush.xpose.msra.mxu0 0.0
  %568 = vmatpush.xpose.msra.mxu0 0.0
  %569 = vmatpush.xpose.msra.mxu0 0.0
  %570 = vmatpush.xpose.msra.mxu0 %v553
  %571 = vmatmul.f32.gmra.mxu0 %v550
  %v572 = vpop.f32.mrf.mxu0
  %v573 = vadd.f32 0.0, %v572
  %574 = vdwg.mxu0
  %v576 = vsel %vm48, %v167, 0
  %v579 = vsel %vm48, %v311, 0
  %581 = vmatpush.xpose.msra.mxu0 0.0
  %582 = vmatpush.xpose.msra.mxu0 0.0
  %583 = vmatpush.xpose.msra.mxu0 0.0
  %584 = vmatpush.xpose.msra.mxu0 0.0
  %585 = vmatpush.xpose.msra.mxu0 0.0
  %586 = vmatpush.xpose.msra.mxu0 0.0
  %587 = vmatpush.xpose.msra.mxu0 0.0
  %588 = vmatpush.xpose.msra.mxu0 0.0
  %589 = vmatpush.xpose.msra.mxu0 0.0
  %590 = vmatpush.xpose.msra.mxu0 0.0
  %591 = vmatpush.xpose.msra.mxu0 0.0
  %592 = vmatpush.xpose.msra.mxu0 0.0
  %593 = vmatpush.xpose.msra.mxu0 0.0
  %594 = vmatpush.xpose.msra.mxu0 0.0
  %595 = vmatpush.xpose.msra.mxu0 0.0
  %596 = vmatpush.xpose.msra.mxu0 %v579
  %597 = vmatmul.f32.gmra.mxu0 %v576
  %v598 = vpop.f32.mrf.mxu0
  %v599 = vadd.f32 0.0, %v598
  %600 = vdwg.mxu0
  %v602 = vsel %vm48, %v190, 0
  %v605 = vsel %vm48, %v334, 0
  %607 = vmatpush.xpose.msra.mxu0 0.0
  %608 = vmatpush.xpose.msra.mxu0 0.0
  %609 = vmatpush.xpose.msra.mxu0 0.0
  %610 = vmatpush.xpose.msra.mxu0 0.0
  %611 = vmatpush.xpose.msra.mxu0 0.0
  %612 = vmatpush.xpose.msra.mxu0 0.0
  %613 = vmatpush.xpose.msra.mxu0 0.0
  %614 = vmatpush.xpose.msra.mxu0 0.0
  %615 = vmatpush.xpose.msra.mxu0 0.0
  %616 = vmatpush.xpose.msra.mxu0 0.0
  %617 = vmatpush.xpose.msra.mxu0 0.0
  %618 = vmatpush.xpose.msra.mxu0 0.0
  %619 = vmatpush.xpose.msra.mxu0 0.0
  %620 = vmatpush.xpose.msra.mxu0 0.0
  %621 = vmatpush.xpose.msra.mxu0 0.0
  %622 = vmatpush.xpose.msra.mxu0 %v605
  %623 = vmatmul.f32.gmra.mxu0 %v602
  %v624 = vpop.f32.mrf.mxu0
  %v625 = vadd.f32 0.0, %v624
  %626 = vdwg.mxu0
  %v628 = vsel %vm48, %v213, 0
  %v631 = vsel %vm48, %v357, 0
  %633 = vmatpush.xpose.msra.mxu0 0.0
  %634 = vmatpush.xpose.msra.mxu0 0.0
  %635 = vmatpush.xpose.msra.mxu0 0.0
  %636 = vmatpush.xpose.msra.mxu0 0.0
  %637 = vmatpush.xpose.msra.mxu0 0.0
  %638 = vmatpush.xpose.msra.mxu0 0.0
  %639 = vmatpush.xpose.msra.mxu0 0.0
  %640 = vmatpush.xpose.msra.mxu0 0.0
  %641 = vmatpush.xpose.msra.mxu0 0.0
  %642 = vmatpush.xpose.msra.mxu0 0.0
  %643 = vmatpush.xpose.msra.mxu0 0.0
  %644 = vmatpush.xpose.msra.mxu0 0.0
  %645 = vmatpush.xpose.msra.mxu0 0.0
  %646 = vmatpush.xpose.msra.mxu0 0.0
  %647 = vmatpush.xpose.msra.mxu0 0.0
  %648 = vmatpush.xpose.msra.mxu0 %v631
  %649 = vmatmul.f32.gmra.mxu0 %v628
  %v650 = vpop.f32.mrf.mxu0
  %v651 = vadd.f32 0.0, %v650
  %652 = vdwg.mxu0
  %v654 = vsel %vm48, %v236, 0
  %v657 = vsel %vm48, %v380, 0
  %659 = vmatpush.xpose.msra.mxu0 0.0
  %660 = vmatpush.xpose.msra.mxu0 0.0
  %661 = vmatpush.xpose.msra.mxu0 0.0
  %662 = vmatpush.xpose.msra.mxu0 0.0
  %663 = vmatpush.xpose.msra.mxu0 0.0
  %664 = vmatpush.xpose.msra.mxu0 0.0
  %665 = vmatpush.xpose.msra.mxu0 0.0
  %666 = vmatpush.xpose.msra.mxu0 0.0
  %667 = vmatpush.xpose.msra.mxu0 0.0
  %668 = vmatpush.xpose.msra.mxu0 0.0
  %669 = vmatpush.xpose.msra.mxu0 0.0
  %670 = vmatpush.xpose.msra.mxu0 0.0
  %671 = vmatpush.xpose.msra.mxu0 0.0
  %672 = vmatpush.xpose.msra.mxu0 0.0
  %673 = vmatpush.xpose.msra.mxu0 0.0
  %674 = vmatpush.xpose.msra.mxu0 %v657
  %675 = vmatmul.f32.gmra.mxu0 %v654
  %v676 = vpop.f32.mrf.mxu0
  %v677 = vadd.f32 0.0, %v676
  %678 = vdwg.mxu0
  %v680 = vsel %vm48, %v259, 0
  %v683 = vsel %vm48, %v403, 0
  %685 = vmatpush.xpose.msra.mxu0 0.0
  %686 = vmatpush.xpose.msra.mxu0 0.0
  %687 = vmatpush.xpose.msra.mxu0 0.0
  %688 = vmatpush.xpose.msra.mxu0 0.0
  %689 = vmatpush.xpose.msra.mxu0 0.0
  %690 = vmatpush.xpose.msra.mxu0 0.0
  %691 = vmatpush.xpose.msra.mxu0 0.0
  %692 = vmatpush.xpose.msra.mxu0 0.0
  %693 = vmatpush.xpose.msra.mxu0 0.0
  %694 = vmatpush.xpose.msra.mxu0 0.0
  %695 = vmatpush.xpose.msra.mxu0 0.0
  %696 = vmatpush.xpose.msra.mxu0 0.0
  %697 = vmatpush.xpose.msra.mxu0 0.0
  %698 = vmatpush.xpose.msra.mxu0 0.0
  %699 = vmatpush.xpose.msra.mxu0 0.0
  %700 = vmatpush.xpose.msra.mxu0 %v683
  %701 = vmatmul.f32.gmra.mxu0 %v680
  %v702 = vpop.f32.mrf.mxu0
  %v703 = vadd.f32 0.0, %v702
  %704 = vdwg.mxu0
  %vm705 = vcmask 64512
  %v706 = vsel %vm705, %v573, -inf
  %707 = vmax.xlane.f32.xlu0 %v706
  %v708 = vpop.xlane.xlu0 %707
  %v709 = vsel %vm705, %v599, -inf
  %710 = vmax.xlane.f32.xlu0 %v709
  %v711 = vpop.xlane.xlu0 %710
  %v712 = vsel %vm705, %v625, -inf
  %713 = vmax.xlane.f32.xlu0 %v712
  %v714 = vpop.xlane.xlu0 %713
  %v715 = vsel %vm705, %v651, -inf
  %716 = vmax.xlane.f32.xlu0 %v715
  %v717 = vpop.xlane.xlu0 %716
  %v718 = vsel %vm705, %v677, -inf
  %719 = vmax.xlane.f32.xlu0 %v718
  %v720 = vpop.xlane.xlu0 %719
  %v721 = vsel %vm705, %v703, -inf
  %722 = vmax.xlane.f32.xlu0 %v721
  %v723 = vpop.xlane.xlu0 %722
  %v724 = vsub.f32 %v573, %v708
  %v725 = vsub.f32 %v599, %v711
  %v726 = vsub.f32 %v625, %v714
  %v727 = vsub.f32 %v651, %v717
  %v728 = vsub.f32 %v677, %v720
  %v729 = vsub.f32 %v703, %v723
  %v730 = vmul.f32 %v724, 1.442695
  %v731 = vpow.pop %v730
  %v732 = vmul.f32 %v725, 1.442695
  %v733 = vpow.pop %v732
  %v734 = vmul.f32 %v726, 1.442695
  %v735 = vpow.pop %v734
  %v736 = vmul.f32 %v727, 1.442695
  %v737 = vpow.pop %v736
  %v738 = vmul.f32 %v728, 1.442695
  %v739 = vpow.pop %v738
  %v740 = vmul.f32 %v729, 1.442695
  %v741 = vpow.pop %v740
  %v742 = vsel %vm705, %v731, 0.0
  %743 = vadd.xlane.f32.xlu0 %v742
  %v744 = vpop.xlane.xlu0 %743
  %v745 = vsel %vm705, %v733, 0.0
  %746 = vadd.xlane.f32.xlu0 %v745
  %v747 = vpop.xlane.xlu0 %746
  %v748 = vsel %vm705, %v735, 0.0
  %749 = vadd.xlane.f32.xlu0 %v748
  %v750 = vpop.xlane.xlu0 %749
  %v751 = vsel %vm705, %v737, 0.0
  %752 = vadd.xlane.f32.xlu0 %v751
  %v753 = vpop.xlane.xlu0 %752
  %v754 = vsel %vm705, %v739, 0.0
  %755 = vadd.xlane.f32.xlu0 %v754
  %v756 = vpop.xlane.xlu0 %755
  %v757 = vsel %vm705, %v741, 0.0
  %758 = vadd.xlane.f32.xlu0 %v757
  %v759 = vpop.xlane.xlu0 %758
  %v760 = vrcp.pop %v744
  %v761 = vrcp.pop %v747
  %v762 = vrcp.pop %v750
  %v763 = vrcp.pop %v753
  %v764 = vrcp.pop %v756
  %v765 = vrcp.pop %v759
  %v766 = vmul.f32 %v731, %v760
  %v767 = vmul.f32 %v733, %v761
  %v768 = vmul.f32 %v735, %v762
  %v769 = vmul.f32 %v737, %v763
  %v770 = vmul.f32 %v739, %v764
  %v771 = vmul.f32 %v741, %v765
  %v773 = vsel %vm705, %v766, 0
  %775 = vmatpush.msra.mxu0 0.0
  %776 = vmatpush.msra.mxu0 0.0
  %777 = vmatpush.msra.mxu0 0.0
  %778 = vmatpush.msra.mxu0 0.0
  %779 = vmatpush.msra.mxu0 0.0
  %780 = vmatpush.msra.mxu0 0.0
  %781 = vmatpush.msra.mxu0 0.0
  %782 = vmatpush.msra.mxu0 0.0
  %783 = vmatpush.msra.mxu0 0.0
  %784 = vmatpush.msra.mxu0 0.0
  %785 = vmatpush.msra.mxu0 0.0
  %786 = vmatpush.msra.mxu0 0.0
  %787 = vmatpush.msra.mxu0 0.0
  %788 = vmatpush.msra.mxu0 0.0
  %789 = vmatpush.msra.mxu0 0.0
  %790 = vmatpush.msra.mxu0 %v432
  %791 = vmatmul.f32.gmra.mxu0 %v773
  %v792 = vpop.f32.mrf.mxu0
  %v793 = vadd.f32 0.0, %v792
  %794 = vdwg.mxu0
  %v796 = vsel %vm705, %v767, 0
  %798 = vmatpush.msra.mxu0 0.0
  %799 = vmatpush.msra.mxu0 0.0
  %800 = vmatpush.msra.mxu0 0.0
  %801 = vmatpush.msra.mxu0 0.0
  %802 = vmatpush.msra.mxu0 0.0
  %803 = vmatpush.msra.mxu0 0.0
  %804 = vmatpush.msra.mxu0 0.0
  %805 = vmatpush.msra.mxu0 0.0
  %806 = vmatpush.msra.mxu0 0.0
  %807 = vmatpush.msra.mxu0 0.0
  %808 = vmatpush.msra.mxu0 0.0
  %809 = vmatpush.msra.mxu0 0.0
  %810 = vmatpush.msra.mxu0 0.0
  %811 = vmatpush.msra.mxu0 0.0
  %812 = vmatpush.msra.mxu0 0.0
  %813 = vmatpush.msra.mxu0 %v455
  %814 = vmatmul.f32.gmra.mxu0 %v796
  %v815 = vpop.f32.mrf.mxu0
  %v816 = vadd.f32 0.0, %v815
  %817 = vdwg.mxu0
  %v819 = vsel %vm705, %v768, 0
  %821 = vmatpush.msra.mxu0 0.0
  %822 = vmatpush.msra.mxu0 0.0
  %823 = vmatpush.msra.mxu0 0.0
  %824 = vmatpush.msra.mxu0 0.0
  %825 = vmatpush.msra.mxu0 0.0
  %826 = vmatpush.msra.mxu0 0.0
  %827 = vmatpush.msra.mxu0 0.0
  %828 = vmatpush.msra.mxu0 0.0
  %829 = vmatpush.msra.mxu0 0.0
  %830 = vmatpush.msra.mxu0 0.0
  %831 = vmatpush.msra.mxu0 0.0
  %832 = vmatpush.msra.mxu0 0.0
  %833 = vmatpush.msra.mxu0 0.0
  %834 = vmatpush.msra.mxu0 0.0
  %835 = vmatpush.msra.mxu0 0.0
  %836 = vmatpush.msra.mxu0 %v478
  %837 = vmatmul.f32.gmra.mxu0 %v819
  %v838 = vpop.f32.mrf.mxu0
  %v839 = vadd.f32 0.0, %v838
  %840 = vdwg.mxu0
  %v842 = vsel %vm705, %v769, 0
  %844 = vmatpush.msra.mxu0 0.0
  %845 = vmatpush.msra.mxu0 0.0
  %846 = vmatpush.msra.mxu0 0.0
  %847 = vmatpush.msra.mxu0 0.0
  %848 = vmatpush.msra.mxu0 0.0
  %849 = vmatpush.msra.mxu0 0.0
  %850 = vmatpush.msra.mxu0 0.0
  %851 = vmatpush.msra.mxu0 0.0
  %852 = vmatpush.msra.mxu0 0.0
  %853 = vmatpush.msra.mxu0 0.0
  %854 = vmatpush.msra.mxu0 0.0
  %855 = vmatpush.msra.mxu0 0.0
  %856 = vmatpush.msra.mxu0 0.0
  %857 = vmatpush.msra.mxu0 0.0
  %858 = vmatpush.msra.mxu0 0.0
  %859 = vmatpush.msra.mxu0 %v501
  %860 = vmatmul.f32.gmra.mxu0 %v842
  %v861 = vpop.f32.mrf.mxu0
  %v862 = vadd.f32 0.0, %v861
  %863 = vdwg.mxu0
  %v865 = vsel %vm705, %v770, 0
  %867 = vmatpush.msra.mxu0 0.0
  %868 = vmatpush.msra.mxu0 0.0
  %869 = vmatpush.msra.mxu0 0.0
  %870 = vmatpush.msra.mxu0 0.0
  %871 = vmatpush.msra.mxu0 0.0
  %872 = vmatpush.msra.mxu0 0.0
  %873 = vmatpush.msra.mxu0 0.0
  %874 = vmatpush.msra.mxu0 0.0
  %875 = vmatpush.msra.mxu0 0.0
  %876 = vmatpush.msra.mxu0 0.0
  %877 = vmatpush.msra.mxu0 0.0
  %878 = vmatpush.msra.mxu0 0.0
  %879 = vmatpush.msra.mxu0 0.0
  %880 = vmatpush.msra.mxu0 0.0
  %881 = vmatpush.msra.mxu0 0.0
  %882 = vmatpush.msra.mxu0 %v524
  %883 = vmatmul.f32.gmra.mxu0 %v865
  %v884 = vpop.f32.mrf.mxu0
  %v885 = vadd.f32 0.0, %v884
  %886 = vdwg.mxu0
  %v888 = vsel %vm705, %v771, 0
  %890 = vmatpush.msra.mxu0 0.0
  %891 = vmatpush.msra.mxu0 0.0
  %892 = vmatpush.msra.mxu0 0.0
  %893 = vmatpush.msra.mxu0 0.0
  %894 = vmatpush.msra.mxu0 0.0
  %895 = vmatpush.msra.mxu0 0.0
  %896 = vmatpush.msra.mxu0 0.0
  %897 = vmatpush.msra.mxu0 0.0
  %898 = vmatpush.msra.mxu0 0.0
  %899 = vmatpush.msra.mxu0 0.0
  %900 = vmatpush.msra.mxu0 0.0
  %901 = vmatpush.msra.mxu0 0.0
  %902 = vmatpush.msra.mxu0 0.0
  %903 = vmatpush.msra.mxu0 0.0
  %904 = vmatpush.msra.mxu0 0.0
  %905 = vmatpush.msra.mxu0 %v547
  %906 = vmatmul.f32.gmra.mxu0 %v888
  %v907 = vpop.f32.mrf.mxu0
  %v908 = vadd.f32 0.0, %v907
  %909 = vdwg.mxu0
  %v910 = vld [vmem:[%s4] sm:$0x7]
  %v911 = vld [vmem:[%s4 + $0x4] sm:$0x7]
  %v912 = vld [vmem:[%s4 + $0x8] sm:$0x7]
  %v913 = vld [vmem:[%s4 + $0xc] sm:$0x7]
  %v914 = vld [vmem:[%s4 + $0x10] sm:$0x7]
  %v915 = vld [vmem:[%s4 + $0x14] sm:$0x7]
  %v917 = vsel %vm48, %v793, 0
  %v920 = vsel %vm119, %v910, 0
  %922 = vmatpush.msra.mxu0 0.0
  %923 = vmatpush.msra.mxu0 0.0
  %924 = vmatpush.msra.mxu0 0.0
  %925 = vmatpush.msra.mxu0 0.0
  %926 = vmatpush.msra.mxu0 0.0
  %927 = vmatpush.msra.mxu0 0.0
  %928 = vmatpush.msra.mxu0 0.0
  %929 = vmatpush.msra.mxu0 0.0
  %930 = vmatpush.msra.mxu0 0.0
  %931 = vmatpush.msra.mxu0 0.0
  %932 = vmatpush.msra.mxu0 0.0
  %933 = vmatpush.msra.mxu0 0.0
  %934 = vmatpush.msra.mxu0 0.0
  %935 = vmatpush.msra.mxu0 0.0
  %936 = vmatpush.msra.mxu0 0.0
  %937 = vmatpush.msra.mxu0 %v920
  %938 = vmatmul.f32.gmra.mxu0 %v917
  %v939 = vpop.f32.mrf.mxu0
  %v940 = vadd.f32 0.0, %v939
  %941 = vdwg.mxu0
  %v943 = vsel %vm48, %v816, 0
  %v946 = vsel %vm119, %v911, 0
  %948 = vmatpush.msra.mxu0 0.0
  %949 = vmatpush.msra.mxu0 0.0
  %950 = vmatpush.msra.mxu0 0.0
  %951 = vmatpush.msra.mxu0 0.0
  %952 = vmatpush.msra.mxu0 0.0
  %953 = vmatpush.msra.mxu0 0.0
  %954 = vmatpush.msra.mxu0 0.0
  %955 = vmatpush.msra.mxu0 0.0
  %956 = vmatpush.msra.mxu0 0.0
  %957 = vmatpush.msra.mxu0 0.0
  %958 = vmatpush.msra.mxu0 0.0
  %959 = vmatpush.msra.mxu0 0.0
  %960 = vmatpush.msra.mxu0 0.0
  %961 = vmatpush.msra.mxu0 0.0
  %962 = vmatpush.msra.mxu0 0.0
  %963 = vmatpush.msra.mxu0 %v946
  %964 = vmatmul.f32.gmra.mxu0 %v943
  %v965 = vpop.f32.mrf.mxu0
  %v966 = vadd.f32 0.0, %v965
  %967 = vdwg.mxu0
  %v969 = vsel %vm48, %v839, 0
  %v972 = vsel %vm119, %v912, 0
  %974 = vmatpush.msra.mxu0 0.0
  %975 = vmatpush.msra.mxu0 0.0
  %976 = vmatpush.msra.mxu0 0.0
  %977 = vmatpush.msra.mxu0 0.0
  %978 = vmatpush.msra.mxu0 0.0
  %979 = vmatpush.msra.mxu0 0.0
  %980 = vmatpush.msra.mxu0 0.0
  %981 = vmatpush.msra.mxu0 0.0
  %982 = vmatpush.msra.mxu0 0.0
  %983 = vmatpush.msra.mxu0 0.0
  %984 = vmatpush.msra.mxu0 0.0
  %985 = vmatpush.msra.mxu0 0.0
  %986 = vmatpush.msra.mxu0 0.0
  %987 = vmatpush.msra.mxu0 0.0
  %988 = vmatpush.msra.mxu0 0.0
  %989 = vmatpush.msra.mxu0 %v972
  %990 = vmatmul.f32.gmra.mxu0 %v969
  %v991 = vpop.f32.mrf.mxu0
  %v992 = vadd.f32 0.0, %v991
  %993 = vdwg.mxu0
  %v995 = vsel %vm48, %v862, 0
  %v998 = vsel %vm119, %v913, 0
  %1000 = vmatpush.msra.mxu0 0.0
  %1001 = vmatpush.msra.mxu0 0.0
  %1002 = vmatpush.msra.mxu0 0.0
  %1003 = vmatpush.msra.mxu0 0.0
  %1004 = vmatpush.msra.mxu0 0.0
  %1005 = vmatpush.msra.mxu0 0.0
  %1006 = vmatpush.msra.mxu0 0.0
  %1007 = vmatpush.msra.mxu0 0.0
  %1008 = vmatpush.msra.mxu0 0.0
  %1009 = vmatpush.msra.mxu0 0.0
  %1010 = vmatpush.msra.mxu0 0.0
  %1011 = vmatpush.msra.mxu0 0.0
  %1012 = vmatpush.msra.mxu0 0.0
  %1013 = vmatpush.msra.mxu0 0.0
  %1014 = vmatpush.msra.mxu0 0.0
  %1015 = vmatpush.msra.mxu0 %v998
  %1016 = vmatmul.f32.gmra.mxu0 %v995
  %v1017 = vpop.f32.mrf.mxu0
  %v1018 = vadd.f32 0.0, %v1017
  %1019 = vdwg.mxu0
  %v1021 = vsel %vm48, %v885, 0
  %v1024 = vsel %vm119, %v914, 0
  %1026 = vmatpush.msra.mxu0 0.0
  %1027 = vmatpush.msra.mxu0 0.0
  %1028 = vmatpush.msra.mxu0 0.0
  %1029 = vmatpush.msra.mxu0 0.0
  %1030 = vmatpush.msra.mxu0 0.0
  %1031 = vmatpush.msra.mxu0 0.0
  %1032 = vmatpush.msra.mxu0 0.0
  %1033 = vmatpush.msra.mxu0 0.0
  %1034 = vmatpush.msra.mxu0 0.0
  %1035 = vmatpush.msra.mxu0 0.0
  %1036 = vmatpush.msra.mxu0 0.0
  %1037 = vmatpush.msra.mxu0 0.0
  %1038 = vmatpush.msra.mxu0 0.0
  %1039 = vmatpush.msra.mxu0 0.0
  %1040 = vmatpush.msra.mxu0 0.0
  %1041 = vmatpush.msra.mxu0 %v1024
  %1042 = vmatmul.f32.gmra.mxu0 %v1021
  %v1043 = vpop.f32.mrf.mxu0
  %v1044 = vadd.f32 0.0, %v1043
  %1045 = vdwg.mxu0
  %v1047 = vsel %vm48, %v908, 0
  %v1050 = vsel %vm119, %v915, 0
  %1052 = vmatpush.msra.mxu0 0.0
  %1053 = vmatpush.msra.mxu0 0.0
  %1054 = vmatpush.msra.mxu0 0.0
  %1055 = vmatpush.msra.mxu0 0.0
  %1056 = vmatpush.msra.mxu0 0.0
  %1057 = vmatpush.msra.mxu0 0.0
  %1058 = vmatpush.msra.mxu0 0.0
  %1059 = vmatpush.msra.mxu0 0.0
  %1060 = vmatpush.msra.mxu0 0.0
  %1061 = vmatpush.msra.mxu0 0.0
  %1062 = vmatpush.msra.mxu0 0.0
  %1063 = vmatpush.msra.mxu0 0.0
  %1064 = vmatpush.msra.mxu0 0.0
  %1065 = vmatpush.msra.mxu0 0.0
  %1066 = vmatpush.msra.mxu0 0.0
  %1067 = vmatpush.msra.mxu0 %v1050
  %1068 = vmatmul.f32.gmra.mxu0 %v1047
  %v1069 = vpop.f32.mrf.mxu0
  %v1070 = vadd.f32 0.0, %v1069
  %1071 = vdwg.mxu0
  %v1072 = vsel %vm48, %v940, 0.0
  %v1073 = vsel %vm48, %v992, 0.0
  %v1074 = vadd.f32 %v1072, %v1073
  %v1075 = vsel %vm48, %v1044, 0.0
  %v1076 = vadd.f32 %v1074, %v1075
  %v1077 = vsel %vm48, %v966, 0.0
  %v1078 = vsel %vm48, %v1018, 0.0
  %v1079 = vadd.f32 %v1077, %v1078
  %v1080 = vsel %vm48, %v1070, 0.0
  %v1081 = vadd.f32 %v1079, %v1080
  %v1082 = vadd.f32 %v108, %v1076
  %v1083 = vadd.f32 %v109, %v1081
  %v1084 = vld [vmem:[%s7] sm:$0x1]
  %v1085 = vld [vmem:[%s8] sm:$0x1]
  %v1086 = vsel %vm48, %v1082, 0.0
  %1087 = vadd.xlane.f32.xlu0 %v1086
  %v1088 = vpop.xlane.xlu0 %1087
  %v1089 = vsel %vm48, %v1083, 0.0
  %1090 = vadd.xlane.f32.xlu0 %v1089
  %v1091 = vpop.xlane.xlu0 %1090
  %v1092 = vmul.f32 %v1088, %v61
  %v1093 = vmul.f32 %v1091, %v61
  %v1094 = vsub.f32 %v1082, %v1092
  %v1095 = vsub.f32 %v1083, %v1093
  %v1096 = vmul.f32 %v1094, %v1094
  %v1097 = vmul.f32 %v1095, %v1095
  %v1098 = vsel %vm48, %v1096, 0.0
  %1099 = vadd.xlane.f32.xlu0 %v1098
  %v1100 = vpop.xlane.xlu0 %1099
  %v1101 = vsel %vm48, %v1097, 0.0
  %1102 = vadd.xlane.f32.xlu0 %v1101
  %v1103 = vpop.xlane.xlu0 %1102
  %v1104 = vmul.f32 %v1100, %v61
  %v1105 = vmul.f32 %v1103, %v61
  %v1106 = vadd.f32 %v1104, 1e-05
  %v1107 = vadd.f32 %v1105, 1e-05
  %v1108 = vrsqrt.pop %v1106
  %v1109 = vmul.f32 %v1108, %v1106
  %v1110 = vmul.f32 %v1109, %v1108
  %v1111 = vmul.f32 0.5, %v1110
  %v1112 = vsub.f32 1.5, %v1111
  %v1113 = vmul.f32 %v1108, %v1112
  %vm1114 = vweird.f32 %v1106
  %vm1115 = vweird.f32 %v1108
  %vm1116 = vmor %vm1114, %vm1115
  %v1117 = vsel %vm1116, %v1108, %v1113
  %v1118 = vrsqrt.pop %v1107
  %v1119 = vmul.f32 %v1118, %v1107
  %v1120 = vmul.f32 %v1119, %v1118
  %v1121 = vmul.f32 0.5, %v1120
  %v1122 = vsub.f32 1.5, %v1121
  %v1123 = vmul.f32 %v1118, %v1122
  %vm1124 = vweird.f32 %v1107
  %vm1125 = vweird.f32 %v1118
  %vm1126 = vmor %vm1124, %vm1125
  %v1127 = vsel %vm1126, %v1118, %v1123
  %v1128 = vmul.f32 %v1094, %v1117
  %v1129 = vmul.f32 %v1095, %v1127
  %v1131 = vperm.slane %v1084, 0
  %v1133 = vmul.f32 %v1128, %v1131
  %v1134 = vmul.f32 %v1129, %v1131
  %v1136 = vperm.slane %v1085, 0
  %v1138 = vadd.f32 %v1133, %v1136
  %v1139 = vadd.f32 %v1134, %v1136
  %v1140 = vld [vmem:[%s9] sm:$0x7]
  %1142 = vset.pattern.permute.xlu0 0
  %1143 = vperm.xlu0 %1142, %v1138
  %v1144 = vpop.permute.xlu0 %1143
  %1147 = vset.pattern.permute.xlu0 0
  %1148 = vperm.xlu0 %1147, %v1139
  %v1149 = vpop.permute.xlu0 %1148
  %v1151 = vperm.slane %v1140, 0
  %v1152 = vmul.f32 %v1144, %v1151
  %v1153 = vmul.f32 %v1149, %v1151
  %1154 = vset.pattern.permute.xlu0 1
  %1155 = vperm.xlu0 %1154, %v1138
  %v1156 = vpop.permute.xlu0 %1155
  %1158 = vset.pattern.permute.xlu0 1
  %1159 = vperm.xlu0 %1158, %v1139
  %v1160 = vpop.permute.xlu0 %1159
  %v1162 = vperm.slane %v1140, 1
  %v1163 = vmul.f32 %v1156, %v1162
  %v1164 = vmul.f32 %v1160, %v1162
  %v1165 = vadd.f32 %v1152, %v1163
  %v1166 = vadd.f32 %v1153, %v1164
  %1167 = vset.pattern.permute.xlu0 2
  %1168 = vperm.xlu0 %1167, %v1138
  %v1169 = vpop.permute.xlu0 %1168
  %1171 = vset.pattern.permute.xlu0 2
  %1172 = vperm.xlu0 %1171, %v1139
  %v1173 = vpop.permute.xlu0 %1172
  %v1175 = vperm.slane %v1140, 2
  %v1176 = vmul.f32 %v1169, %v1175
  %v1177 = vmul.f32 %v1173, %v1175
  %v1178 = vadd.f32 %v1165, %v1176
  %v1179 = vadd.f32 %v1166, %v1177
  %v1180 = vld [vmem:[%s10] sm:$0x1]
  %v1182 = vperm.slane %v1180, 0
  %v1184 = vadd.f32 %v1178, %v1182
  %v1185 = vadd.f32 %v1179, %v1182
  %v1186 = vmax.f32 %v1184, 0.0
  %v1187 = vmax.f32 %v1185, 0.0
  %v1188 = vld [vmem:[%s11] sm:$0xff]
  %v1189 = vld [vmem:[%s11 + $0x8] sm:$0x1]
  %1191 = vset.pattern.permute.xlu0 0
  %1192 = vperm.xlu0 %1191, %v1186
  %v1193 = vpop.permute.xlu0 %1192
  %1196 = vset.pattern.permute.xlu0 0
  %1197 = vperm.xlu0 %1196, %v1187
  %v1198 = vpop.permute.xlu0 %1197
  %v1200 = vperm.slane %v1188, 0
  %v1201 = vmul.f32 %v1193, %v1200
  %v1202 = vmul.f32 %v1198, %v1200
  %1203 = vset.pattern.permute.xlu0 1
  %1204 = vperm.xlu0 %1203, %v1186
  %v1205 = vpop.permute.xlu0 %1204
  %1207 = vset.pattern.permute.xlu0 1
  %1208 = vperm.xlu0 %1207, %v1187
  %v1209 = vpop.permute.xlu0 %1208
  %v1211 = vperm.slane %v1188, 1
  %v1212 = vmul.f32 %v1205, %v1211
  %v1213 = vmul.f32 %v1209, %v1211
  %v1214 = vadd.f32 %v1201, %v1212
  %v1215 = vadd.f32 %v1202, %v1213
  %1216 = vset.pattern.permute.xlu0 2
  %1217 = vperm.xlu0 %1216, %v1186
  %v1218 = vpop.permute.xlu0 %1217
  %1220 = vset.pattern.permute.xlu0 2
  %1221 = vperm.xlu0 %1220, %v1187
  %v1222 = vpop.permute.xlu0 %1221
  %v1224 = vperm.slane %v1188, 2
  %v1225 = vmul.f32 %v1218, %v1224
  %v1226 = vmul.f32 %v1222, %v1224
  %v1227 = vadd.f32 %v1214, %v1225
  %v1228 = vadd.f32 %v1215, %v1226
  %1229 = vset.pattern.permute.xlu0 3
  %1230 = vperm.xlu0 %1229, %v1186
  %v1231 = vpop.permute.xlu0 %1230
  %1233 = vset.pattern.permute.xlu0 3
  %1234 = vperm.xlu0 %1233, %v1187
  %v1235 = vpop.permute.xlu0 %1234
  %v1237 = vperm.slane %v1188, 3
  %v1238 = vmul.f32 %v1231, %v1237
  %v1239 = vmul.f32 %v1235, %v1237
  %v1240 = vadd.f32 %v1227, %v1238
  %v1241 = vadd.f32 %v1228, %v1239
  %1242 = vset.pattern.permute.xlu0 4
  %1243 = vperm.xlu0 %1242, %v1186
  %v1244 = vpop.permute.xlu0 %1243
  %1246 = vset.pattern.permute.xlu0 4
  %1247 = vperm.xlu0 %1246, %v1187
  %v1248 = vpop.permute.xlu0 %1247
  %v1250 = vperm.slane %v1188, 4
  %v1251 = vmul.f32 %v1244, %v1250
  %v1252 = vmul.f32 %v1248, %v1250
  %v1253 = vadd.f32 %v1240, %v1251
  %v1254 = vadd.f32 %v1241, %v1252
  %1255 = vset.pattern.permute.xlu0 5
  %1256 = vperm.xlu0 %1255, %v1186
  %v1257 = vpop.permute.xlu0 %1256
  %1259 = vset.pattern.permute.xlu0 5
  %1260 = vperm.xlu0 %1259, %v1187
  %v1261 = vpop.permute.xlu0 %1260
  %v1263 = vperm.slane %v1188, 5
  %v1264 = vmul.f32 %v1257, %v1263
  %v1265 = vmul.f32 %v1261, %v1263
  %v1266 = vadd.f32 %v1253, %v1264
  %v1267 = vadd.f32 %v1254, %v1265
  %1268 = vset.pattern.permute.xlu0 6
  %1269 = vperm.xlu0 %1268, %v1186
  %v1270 = vpop.permute.xlu0 %1269
  %1272 = vset.pattern.permute.xlu0 6
  %1273 = vperm.xlu0 %1272, %v1187
  %v1274 = vpop.permute.xlu0 %1273
  %v1276 = vperm.slane %v1188, 6
  %v1277 = vmul.f32 %v1270, %v1276
  %v1278 = vmul.f32 %v1274, %v1276
  %v1279 = vadd.f32 %v1266, %v1277
  %v1280 = vadd.f32 %v1267, %v1278
  %1281 = vset.pattern.permute.xlu0 7
  %1282 = vperm.xlu0 %1281, %v1186
  %v1283 = vpop.permute.xlu0 %1282
  %1285 = vset.pattern.permute.xlu0 7
  %1286 = vperm.xlu0 %1285, %v1187
  %v1287 = vpop.permute.xlu0 %1286
  %v1289 = vperm.slane %v1188, 7
  %v1290 = vmul.f32 %v1283, %v1289
  %v1291 = vmul.f32 %v1287, %v1289
  %v1292 = vadd.f32 %v1279, %v1290
  %v1293 = vadd.f32 %v1280, %v1291
  %1294 = vset.pattern.permute.xlu0 8
  %1295 = vperm.xlu0 %1294, %v1186
  %v1296 = vpop.permute.xlu0 %1295
  %1298 = vset.pattern.permute.xlu0 8
  %1299 = vperm.xlu0 %1298, %v1187
  %v1300 = vpop.permute.xlu0 %1299
  %v1302 = vperm.slane %v1189, 0
  %v1303 = vmul.f32 %v1296, %v1302
  %v1304 = vmul.f32 %v1300, %v1302
  %v1305 = vadd.f32 %v1292, %v1303
  %v1306 = vadd.f32 %v1293, %v1304
  %v1307 = vld [vmem:[%s12] sm:$0x1]
  %v1309 = vperm.slane %v1307, 0
  %v1311 = vadd.f32 %v1305, %v1309
  %v1312 = vadd.f32 %v1306, %v1309
  %v1313 = vadd.f32 %v1138, %v1311
  %v1314 = vadd.f32 %v1139, %v1312
  %1315 = vst.msk [vmem:[%s13] sm:$0xff] %vm48, %v1313
  %1316 = vst.msk [vmem:[%s13 + $0x8] sm:$0xff] %vm48, %v1314
  // Predicated region
  $region54: #{tpu_custom_call.1} parent=0 // pred_check
    _
  $region55: #{tpu_custom_call.1} parent=0 // pred_check_branch
    %1318 = sbr.rel (0) target = $region57
  $region56: #{tpu_custom_call.1} parent=0 // pred_region
    _
  $region57: #{tpu_custom_call.1} parent=0 // pred_fallthru
    _
  // Predicated region
  $region58: #{tpu_custom_call.1} parent=0 // pred_check
    _
  $region59: #{tpu_custom_call.1} parent=0 // pred_check_branch
    %1320 = sbr.rel (0) target = $region61
  $region60: #{tpu_custom_call.1} parent=0 // pred_region
    _
  $region61: #{tpu_custom_call.1} parent=0 // pred_fallthru
    _

</llo_original>
